<compile_context>
chip_gen: v7x
topology: tpu7x:2x2x1
jax: 0.10.0
libtpu: 0.0.40
codegen_flags: <defaults>
</compile_context>

<pallas_src>
import numpy as np
import jax
import jax.numpy as jnp
from jax import lax
from jax.experimental import pallas as pl
from jax.experimental.pallas import tpu as pltpu

KH = KW = 4
COUT = 4
POOL = 4


def net_kernel(x_ref, w_ref, conv_ref, relu_ref, pool_ref):
    # x_ref   : (1, 1, H, W)          VMEM
    # w_ref   : (COUT, KH*KW)         SMEM (scalar reads)
    # conv_ref/relu_ref : (1, COUT, Ho, Wo)  VMEM
    # pool_ref:           (1, COUT, Ph, Pw)  VMEM
    _, _, H, W = x_ref.shape
    Ho = H - KH + 1
    Wo = W - KW + 1
    Ph = (Ho - POOL) // POOL + 1
    Pw = (Wo - POOL) // POOL + 1

    x = x_ref[0, 0, :, :]                                   # (H, W)

    # ---- conv: hoist the 16 shifted views once, reuse for all channels ----
    shifted = [x[ki:ki + Ho, kj:kj + Wo]                    # (Ho, Wo) each
               for ki in range(KH) for kj in range(KW)]

    accs = [jnp.zeros((Ho, Wo), jnp.float32) for _ in range(COUT)]
    for k, s in enumerate(shifted):                         # slice-outer loop:
        for co in range(COUT):                              # every channel uses
            accs[co] = accs[co] + w_ref[co, k] * s          # the same slice (VPU MAC)

    for co in range(COUT):
        acc = accs[co]
        conv_ref[0, co, :, :] = acc                         # one full-tile store

        r = jnp.maximum(acc, jnp.float32(0.0))
        relu_ref[0, co, :, :] = r                           # one full-tile store

        # ---- maxpool 4x4, stride 4, floor mode (== nn.MaxPool2d(4, 4)) ----
        # stage 1: reduce each group of POOL rows (contiguous sublane slices)
        row_max = jnp.concatenate(
            [jnp.max(r[pi * POOL:(pi + 1) * POOL, :], axis=0, keepdims=True)
             for pi in range(Ph)], axis=0)                  # (Ph, Wo)
        # stage 2: reduce each group of POOL columns (contiguous lane slices)
        pooled = jnp.concatenate(
            [jnp.max(row_max[:, pj * POOL:(pj + 1) * POOL], axis=1, keepdims=True)
             for pj in range(Pw)], axis=1)                  # (Ph, Pw)
        pool_ref[0, co, :, :] = pooled                      # one full-tile store


def net_forward(x, w_flat):
    N, Cin, H, W = x.shape
    if Cin != 1:
        raise ValueError("Net expects a single input channel (Cin=1).")
    Ho, Wo = H - KH + 1, W - KW + 1
    if Ho < POOL or Wo < POOL:
        # nn.MaxPool2d(4,4) needs at least one full window: H, W >= KH + POOL - 1 = 7
        raise ValueError("Input too small: H and W must be >= %d." % (KH + POOL - 1))
    Ph = (Ho - POOL) // POOL + 1
    Pw = (Wo - POOL) // POOL + 1

    out_shapes = (
        jax.ShapeDtypeStruct((N, COUT, Ho, Wo), jnp.float32),
        jax.ShapeDtypeStruct((N, COUT, Ho, Wo), jnp.float32),
        jax.ShapeDtypeStruct((N, COUT, Ph, Pw), jnp.float32),
    )
    return pl.pallas_call(
        net_kernel,
        out_shape=out_shapes,
        grid=(N,),
        in_specs=[
            # one image per grid step, pipelined HBM<->VMEM
            pl.BlockSpec((1, 1, H, W), lambda n: (n, 0, 0, 0)),
            # full weight table in SMEM (scalar reads), same block every step
            pl.BlockSpec((COUT, KH * KW), lambda n: (0, 0),
                         memory_space=pltpu.MemorySpace.SMEM),
        ],
        out_specs=(
            pl.BlockSpec((1, COUT, Ho, Wo), lambda n: (n, 0, 0, 0)),
            pl.BlockSpec((1, COUT, Ho, Wo), lambda n: (n, 0, 0, 0)),
            pl.BlockSpec((1, COUT, Ph, Pw), lambda n: (n, 0, 0, 0)),
        ),
        compiler_params=pltpu.CompilerParams(
            dimension_semantics=("parallel",),        # batch axis sharded across TCs (v7x)
            vmem_limit_bytes=32 * 1024 * 1024,        # safe on v5e/v6e/v7x
        ),
    )(x, w_flat)


def make_filters():
    # Deterministic weights: same filters as the PyTorch script.
    filter1 = np.array([[-1, -1, 1, 1],
                        [-1, -1, 1, 1],
                        [-1, -1, 1, 1],
                        [-1, -1, 1, 1]], dtype=np.float32)
    filter2 = -filter1
    filter3 = filter1.T
    filter4 = -filter3
    filters = np.stack([filter1, filter2, filter3, filter4], axis=0)  # (4, 4, 4)
    return jnp.asarray(filters, dtype=jnp.float32)


if __name__ == "__main__":
    key = jax.random.PRNGKey(0)
    N, Cin, H, W = 2, 1, 16, 16
    x = jax.random.normal(key, (N, Cin, H, W), dtype=jnp.float32)

    w = make_filters()                       # (4, 4, 4)
    w_flat = w.reshape(COUT, KH * KW)        # (4, 16) for SMEM scalar indexing

    convx, relux, pooledx = net_forward(x, w_flat)
    jax.block_until_ready((convx, relux, pooledx))

    # Pure-JAX reference for correctness.
    w4 = w[:, None, :, :]  # (Cout, Cin=1, KH, KW)
    conv_ref = lax.conv_general_dilated(
        x, w4, window_strides=(1, 1), padding="VALID",
        dimension_numbers=("NCHW", "OIHW", "NCHW"))
    relu_ref = jnp.maximum(conv_ref, 0.0)
    pool_ref = lax.reduce_window(
        relu_ref, -jnp.inf, lax.max,
        window_dimensions=(1, 1, POOL, POOL),
        window_strides=(1, 1, POOL, POOL),
        padding="VALID")

    np.testing.assert_allclose(np.asarray(convx), np.asarray(conv_ref), atol=1e-4, rtol=1e-4)
    np.testing.assert_allclose(np.asarray(relux), np.asarray(relu_ref), atol=1e-4, rtol=1e-4)
    np.testing.assert_allclose(np.asarray(pooledx), np.asarray(pool_ref), atol=1e-4, rtol=1e-4)

    print("KERNEL_OK")
</pallas_src>

<mosaic_0001>
module attributes {stable_mosaic.version = 11 : i64} {
  func.func @net_kernel(%arg0: i32, %arg1: memref<1x1x16x16xf32, #tpu.memory_space<vmem>>, %arg2: memref<4x16xf32, #tpu.memory_space<smem>>, %arg3: memref<1x4x13x13xf32, #tpu.memory_space<vmem>>, %arg4: memref<1x4x13x13xf32, #tpu.memory_space<vmem>>, %arg5: memref<1x4x3x3xf32, #tpu.memory_space<vmem>>) attributes {dimension_semantics = [#tpu.dimension_semantics<parallel>], iteration_bounds = array<i64: 2>, scalar_prefetch = 0 : i64, scratch_operands = 0 : i64, tpu.core_type = #tpu.core_type<tc>, window_params = [{transform_indices = @transform_0, window_bounds = array<i64: 1, 1, 16, 16>}, {transform_indices = @transform_1, window_bounds = array<i64: 4, 16>}, {transform_indices = @transform_2, window_bounds = array<i64: 1, 4, 13, 13>}, {transform_indices = @transform_3, window_bounds = array<i64: 1, 4, 13, 13>}, {transform_indices = @transform_4, window_bounds = array<i64: 1, 4, 3, 3>}]} {
    %c0 = arith.constant 0 : index
    %c0_0 = arith.constant 0 : index
    %c0_1 = arith.constant 0 : index
    %c0_2 = arith.constant 0 : index
    %0 = vector.load %arg1[%c0, %c0_0, %c0_1, %c0_2] : memref<1x1x16x16xf32, #tpu.memory_space<vmem>>, vector<1x1x16x16xf32>
    %1 = vector.shape_cast %0 : vector<1x1x16x16xf32> to vector<16x16xf32>
    %2 = vector.extract_strided_slice %1 {offsets = [0, 0], sizes = [13, 13], strides = [1, 1]} : vector<16x16xf32> to vector<13x13xf32>
    %3 = vector.extract_strided_slice %1 {offsets = [0, 1], sizes = [13, 13], strides = [1, 1]} : vector<16x16xf32> to vector<13x13xf32>
    %4 = vector.extract_strided_slice %1 {offsets = [0, 2], sizes = [13, 13], strides = [1, 1]} : vector<16x16xf32> to vector<13x13xf32>
    %5 = vector.extract_strided_slice %1 {offsets = [0, 3], sizes = [13, 13], strides = [1, 1]} : vector<16x16xf32> to vector<13x13xf32>
    %6 = vector.extract_strided_slice %1 {offsets = [1, 0], sizes = [13, 13], strides = [1, 1]} : vector<16x16xf32> to vector<13x13xf32>
    %7 = vector.extract_strided_slice %1 {offsets = [1, 1], sizes = [13, 13], strides = [1, 1]} : vector<16x16xf32> to vector<13x13xf32>
    %8 = vector.extract_strided_slice %1 {offsets = [1, 2], sizes = [13, 13], strides = [1, 1]} : vector<16x16xf32> to vector<13x13xf32>
    %9 = vector.extract_strided_slice %1 {offsets = [1, 3], sizes = [13, 13], strides = [1, 1]} : vector<16x16xf32> to vector<13x13xf32>
    %10 = vector.extract_strided_slice %1 {offsets = [2, 0], sizes = [13, 13], strides = [1, 1]} : vector<16x16xf32> to vector<13x13xf32>
    %11 = vector.extract_strided_slice %1 {offsets = [2, 1], sizes = [13, 13], strides = [1, 1]} : vector<16x16xf32> to vector<13x13xf32>
    %12 = vector.extract_strided_slice %1 {offsets = [2, 2], sizes = [13, 13], strides = [1, 1]} : vector<16x16xf32> to vector<13x13xf32>
    %13 = vector.extract_strided_slice %1 {offsets = [2, 3], sizes = [13, 13], strides = [1, 1]} : vector<16x16xf32> to vector<13x13xf32>
    %14 = vector.extract_strided_slice %1 {offsets = [3, 0], sizes = [13, 13], strides = [1, 1]} : vector<16x16xf32> to vector<13x13xf32>
    %15 = vector.extract_strided_slice %1 {offsets = [3, 1], sizes = [13, 13], strides = [1, 1]} : vector<16x16xf32> to vector<13x13xf32>
    %16 = vector.extract_strided_slice %1 {offsets = [3, 2], sizes = [13, 13], strides = [1, 1]} : vector<16x16xf32> to vector<13x13xf32>
    %17 = vector.extract_strided_slice %1 {offsets = [3, 3], sizes = [13, 13], strides = [1, 1]} : vector<16x16xf32> to vector<13x13xf32>
    %cst = arith.constant 0.000000e+00 : f32
    %18 = vector.broadcast %cst : f32 to vector<13x13xf32>
    %cst_3 = arith.constant 0.000000e+00 : f32
    %19 = vector.broadcast %cst_3 : f32 to vector<13x13xf32>
    %cst_4 = arith.constant 0.000000e+00 : f32
    %20 = vector.broadcast %cst_4 : f32 to vector<13x13xf32>
    %cst_5 = arith.constant 0.000000e+00 : f32
    %21 = vector.broadcast %cst_5 : f32 to vector<13x13xf32>
    %c0_6 = arith.constant 0 : index
    %c0_7 = arith.constant 0 : index
    %22 = memref.load %arg2[%c0_6, %c0_7] : memref<4x16xf32, #tpu.memory_space<smem>>
    %23 = vector.broadcast %22 : f32 to vector<13x13xf32>
    %24 = arith.mulf %23, %2 : vector<13x13xf32>
    %25 = arith.addf %18, %24 : vector<13x13xf32>
    %c1 = arith.constant 1 : index
    %c0_8 = arith.constant 0 : index
    %26 = memref.load %arg2[%c1, %c0_8] : memref<4x16xf32, #tpu.memory_space<smem>>
    %27 = vector.broadcast %26 : f32 to vector<13x13xf32>
    %28 = arith.mulf %27, %2 : vector<13x13xf32>
    %29 = arith.addf %19, %28 : vector<13x13xf32>
    %c2 = arith.constant 2 : index
    %c0_9 = arith.constant 0 : index
    %30 = memref.load %arg2[%c2, %c0_9] : memref<4x16xf32, #tpu.memory_space<smem>>
    %31 = vector.broadcast %30 : f32 to vector<13x13xf32>
    %32 = arith.mulf %31, %2 : vector<13x13xf32>
    %33 = arith.addf %20, %32 : vector<13x13xf32>
    %c3 = arith.constant 3 : index
    %c0_10 = arith.constant 0 : index
    %34 = memref.load %arg2[%c3, %c0_10] : memref<4x16xf32, #tpu.memory_space<smem>>
    %35 = vector.broadcast %34 : f32 to vector<13x13xf32>
    %36 = arith.mulf %35, %2 : vector<13x13xf32>
    %37 = arith.addf %21, %36 : vector<13x13xf32>
    %c0_11 = arith.constant 0 : index
    %c1_12 = arith.constant 1 : index
    %38 = memref.load %arg2[%c0_11, %c1_12] : memref<4x16xf32, #tpu.memory_space<smem>>
    %39 = vector.broadcast %38 : f32 to vector<13x13xf32>
    %40 = arith.mulf %39, %3 : vector<13x13xf32>
    %41 = arith.addf %25, %40 : vector<13x13xf32>
    %c1_13 = arith.constant 1 : index
    %c1_14 = arith.constant 1 : index
    %42 = memref.load %arg2[%c1_13, %c1_14] : memref<4x16xf32, #tpu.memory_space<smem>>
    %43 = vector.broadcast %42 : f32 to vector<13x13xf32>
    %44 = arith.mulf %43, %3 : vector<13x13xf32>
    %45 = arith.addf %29, %44 : vector<13x13xf32>
    %c2_15 = arith.constant 2 : index
    %c1_16 = arith.constant 1 : index
    %46 = memref.load %arg2[%c2_15, %c1_16] : memref<4x16xf32, #tpu.memory_space<smem>>
    %47 = vector.broadcast %46 : f32 to vector<13x13xf32>
    %48 = arith.mulf %47, %3 : vector<13x13xf32>
    %49 = arith.addf %33, %48 : vector<13x13xf32>
    %c3_17 = arith.constant 3 : index
    %c1_18 = arith.constant 1 : index
    %50 = memref.load %arg2[%c3_17, %c1_18] : memref<4x16xf32, #tpu.memory_space<smem>>
    %51 = vector.broadcast %50 : f32 to vector<13x13xf32>
    %52 = arith.mulf %51, %3 : vector<13x13xf32>
    %53 = arith.addf %37, %52 : vector<13x13xf32>
    %c0_19 = arith.constant 0 : index
    %c2_20 = arith.constant 2 : index
    %54 = memref.load %arg2[%c0_19, %c2_20] : memref<4x16xf32, #tpu.memory_space<smem>>
    %55 = vector.broadcast %54 : f32 to vector<13x13xf32>
    %56 = arith.mulf %55, %4 : vector<13x13xf32>
    %57 = arith.addf %41, %56 : vector<13x13xf32>
    %c1_21 = arith.constant 1 : index
    %c2_22 = arith.constant 2 : index
    %58 = memref.load %arg2[%c1_21, %c2_22] : memref<4x16xf32, #tpu.memory_space<smem>>
    %59 = vector.broadcast %58 : f32 to vector<13x13xf32>
    %60 = arith.mulf %59, %4 : vector<13x13xf32>
    %61 = arith.addf %45, %60 : vector<13x13xf32>
    %c2_23 = arith.constant 2 : index
    %c2_24 = arith.constant 2 : index
    %62 = memref.load %arg2[%c2_23, %c2_24] : memref<4x16xf32, #tpu.memory_space<smem>>
    %63 = vector.broadcast %62 : f32 to vector<13x13xf32>
    %64 = arith.mulf %63, %4 : vector<13x13xf32>
    %65 = arith.addf %49, %64 : vector<13x13xf32>
    %c3_25 = arith.constant 3 : index
    %c2_26 = arith.constant 2 : index
    %66 = memref.load %arg2[%c3_25, %c2_26] : memref<4x16xf32, #tpu.memory_space<smem>>
    %67 = vector.broadcast %66 : f32 to vector<13x13xf32>
    %68 = arith.mulf %67, %4 : vector<13x13xf32>
    %69 = arith.addf %53, %68 : vector<13x13xf32>
    %c0_27 = arith.constant 0 : index
    %c3_28 = arith.constant 3 : index
    %70 = memref.load %arg2[%c0_27, %c3_28] : memref<4x16xf32, #tpu.memory_space<smem>>
    %71 = vector.broadcast %70 : f32 to vector<13x13xf32>
    %72 = arith.mulf %71, %5 : vector<13x13xf32>
    %73 = arith.addf %57, %72 : vector<13x13xf32>
    %c1_29 = arith.constant 1 : index
    %c3_30 = arith.constant 3 : index
    %74 = memref.load %arg2[%c1_29, %c3_30] : memref<4x16xf32, #tpu.memory_space<smem>>
    %75 = vector.broadcast %74 : f32 to vector<13x13xf32>
    %76 = arith.mulf %75, %5 : vector<13x13xf32>
    %77 = arith.addf %61, %76 : vector<13x13xf32>
    %c2_31 = arith.constant 2 : index
    %c3_32 = arith.constant 3 : index
    %78 = memref.load %arg2[%c2_31, %c3_32] : memref<4x16xf32, #tpu.memory_space<smem>>
    %79 = vector.broadcast %78 : f32 to vector<13x13xf32>
    %80 = arith.mulf %79, %5 : vector<13x13xf32>
    %81 = arith.addf %65, %80 : vector<13x13xf32>
    %c3_33 = arith.constant 3 : index
    %c3_34 = arith.constant 3 : index
    %82 = memref.load %arg2[%c3_33, %c3_34] : memref<4x16xf32, #tpu.memory_space<smem>>
    %83 = vector.broadcast %82 : f32 to vector<13x13xf32>
    %84 = arith.mulf %83, %5 : vector<13x13xf32>
    %85 = arith.addf %69, %84 : vector<13x13xf32>
    %c0_35 = arith.constant 0 : index
    %c4 = arith.constant 4 : index
    %86 = memref.load %arg2[%c0_35, %c4] : memref<4x16xf32, #tpu.memory_space<smem>>
    %87 = vector.broadcast %86 : f32 to vector<13x13xf32>
    %88 = arith.mulf %87, %6 : vector<13x13xf32>
    %89 = arith.addf %73, %88 : vector<13x13xf32>
    %c1_36 = arith.constant 1 : index
    %c4_37 = arith.constant 4 : index
    %90 = memref.load %arg2[%c1_36, %c4_37] : memref<4x16xf32, #tpu.memory_space<smem>>
    %91 = vector.broadcast %90 : f32 to vector<13x13xf32>
    %92 = arith.mulf %91, %6 : vector<13x13xf32>
    %93 = arith.addf %77, %92 : vector<13x13xf32>
    %c2_38 = arith.constant 2 : index
    %c4_39 = arith.constant 4 : index
    %94 = memref.load %arg2[%c2_38, %c4_39] : memref<4x16xf32, #tpu.memory_space<smem>>
    %95 = vector.broadcast %94 : f32 to vector<13x13xf32>
    %96 = arith.mulf %95, %6 : vector<13x13xf32>
    %97 = arith.addf %81, %96 : vector<13x13xf32>
    %c3_40 = arith.constant 3 : index
    %c4_41 = arith.constant 4 : index
    %98 = memref.load %arg2[%c3_40, %c4_41] : memref<4x16xf32, #tpu.memory_space<smem>>
    %99 = vector.broadcast %98 : f32 to vector<13x13xf32>
    %100 = arith.mulf %99, %6 : vector<13x13xf32>
    %101 = arith.addf %85, %100 : vector<13x13xf32>
    %c0_42 = arith.constant 0 : index
    %c5 = arith.constant 5 : index
    %102 = memref.load %arg2[%c0_42, %c5] : memref<4x16xf32, #tpu.memory_space<smem>>
    %103 = vector.broadcast %102 : f32 to vector<13x13xf32>
    %104 = arith.mulf %103, %7 : vector<13x13xf32>
    %105 = arith.addf %89, %104 : vector<13x13xf32>
    %c1_43 = arith.constant 1 : index
    %c5_44 = arith.constant 5 : index
    %106 = memref.load %arg2[%c1_43, %c5_44] : memref<4x16xf32, #tpu.memory_space<smem>>
    %107 = vector.broadcast %106 : f32 to vector<13x13xf32>
    %108 = arith.mulf %107, %7 : vector<13x13xf32>
    %109 = arith.addf %93, %108 : vector<13x13xf32>
    %c2_45 = arith.constant 2 : index
    %c5_46 = arith.constant 5 : index
    %110 = memref.load %arg2[%c2_45, %c5_46] : memref<4x16xf32, #tpu.memory_space<smem>>
    %111 = vector.broadcast %110 : f32 to vector<13x13xf32>
    %112 = arith.mulf %111, %7 : vector<13x13xf32>
    %113 = arith.addf %97, %112 : vector<13x13xf32>
    %c3_47 = arith.constant 3 : index
    %c5_48 = arith.constant 5 : index
    %114 = memref.load %arg2[%c3_47, %c5_48] : memref<4x16xf32, #tpu.memory_space<smem>>
    %115 = vector.broadcast %114 : f32 to vector<13x13xf32>
    %116 = arith.mulf %115, %7 : vector<13x13xf32>
    %117 = arith.addf %101, %116 : vector<13x13xf32>
    %c0_49 = arith.constant 0 : index
    %c6 = arith.constant 6 : index
    %118 = memref.load %arg2[%c0_49, %c6] : memref<4x16xf32, #tpu.memory_space<smem>>
    %119 = vector.broadcast %118 : f32 to vector<13x13xf32>
    %120 = arith.mulf %119, %8 : vector<13x13xf32>
    %121 = arith.addf %105, %120 : vector<13x13xf32>
    %c1_50 = arith.constant 1 : index
    %c6_51 = arith.constant 6 : index
    %122 = memref.load %arg2[%c1_50, %c6_51] : memref<4x16xf32, #tpu.memory_space<smem>>
    %123 = vector.broadcast %122 : f32 to vector<13x13xf32>
    %124 = arith.mulf %123, %8 : vector<13x13xf32>
    %125 = arith.addf %109, %124 : vector<13x13xf32>
    %c2_52 = arith.constant 2 : index
    %c6_53 = arith.constant 6 : index
    %126 = memref.load %arg2[%c2_52, %c6_53] : memref<4x16xf32, #tpu.memory_space<smem>>
    %127 = vector.broadcast %126 : f32 to vector<13x13xf32>
    %128 = arith.mulf %127, %8 : vector<13x13xf32>
    %129 = arith.addf %113, %128 : vector<13x13xf32>
    %c3_54 = arith.constant 3 : index
    %c6_55 = arith.constant 6 : index
    %130 = memref.load %arg2[%c3_54, %c6_55] : memref<4x16xf32, #tpu.memory_space<smem>>
    %131 = vector.broadcast %130 : f32 to vector<13x13xf32>
    %132 = arith.mulf %131, %8 : vector<13x13xf32>
    %133 = arith.addf %117, %132 : vector<13x13xf32>
    %c0_56 = arith.constant 0 : index
    %c7 = arith.constant 7 : index
    %134 = memref.load %arg2[%c0_56, %c7] : memref<4x16xf32, #tpu.memory_space<smem>>
    %135 = vector.broadcast %134 : f32 to vector<13x13xf32>
    %136 = arith.mulf %135, %9 : vector<13x13xf32>
    %137 = arith.addf %121, %136 : vector<13x13xf32>
    %c1_57 = arith.constant 1 : index
    %c7_58 = arith.constant 7 : index
    %138 = memref.load %arg2[%c1_57, %c7_58] : memref<4x16xf32, #tpu.memory_space<smem>>
    %139 = vector.broadcast %138 : f32 to vector<13x13xf32>
    %140 = arith.mulf %139, %9 : vector<13x13xf32>
    %141 = arith.addf %125, %140 : vector<13x13xf32>
    %c2_59 = arith.constant 2 : index
    %c7_60 = arith.constant 7 : index
    %142 = memref.load %arg2[%c2_59, %c7_60] : memref<4x16xf32, #tpu.memory_space<smem>>
    %143 = vector.broadcast %142 : f32 to vector<13x13xf32>
    %144 = arith.mulf %143, %9 : vector<13x13xf32>
    %145 = arith.addf %129, %144 : vector<13x13xf32>
    %c3_61 = arith.constant 3 : index
    %c7_62 = arith.constant 7 : index
    %146 = memref.load %arg2[%c3_61, %c7_62] : memref<4x16xf32, #tpu.memory_space<smem>>
    %147 = vector.broadcast %146 : f32 to vector<13x13xf32>
    %148 = arith.mulf %147, %9 : vector<13x13xf32>
    %149 = arith.addf %133, %148 : vector<13x13xf32>
    %c0_63 = arith.constant 0 : index
    %c8 = arith.constant 8 : index
    %150 = memref.load %arg2[%c0_63, %c8] : memref<4x16xf32, #tpu.memory_space<smem>>
    %151 = vector.broadcast %150 : f32 to vector<13x13xf32>
    %152 = arith.mulf %151, %10 : vector<13x13xf32>
    %153 = arith.addf %137, %152 : vector<13x13xf32>
    %c1_64 = arith.constant 1 : index
    %c8_65 = arith.constant 8 : index
    %154 = memref.load %arg2[%c1_64, %c8_65] : memref<4x16xf32, #tpu.memory_space<smem>>
    %155 = vector.broadcast %154 : f32 to vector<13x13xf32>
    %156 = arith.mulf %155, %10 : vector<13x13xf32>
    %157 = arith.addf %141, %156 : vector<13x13xf32>
    %c2_66 = arith.constant 2 : index
    %c8_67 = arith.constant 8 : index
    %158 = memref.load %arg2[%c2_66, %c8_67] : memref<4x16xf32, #tpu.memory_space<smem>>
    %159 = vector.broadcast %158 : f32 to vector<13x13xf32>
    %160 = arith.mulf %159, %10 : vector<13x13xf32>
    %161 = arith.addf %145, %160 : vector<13x13xf32>
    %c3_68 = arith.constant 3 : index
    %c8_69 = arith.constant 8 : index
    %162 = memref.load %arg2[%c3_68, %c8_69] : memref<4x16xf32, #tpu.memory_space<smem>>
    %163 = vector.broadcast %162 : f32 to vector<13x13xf32>
    %164 = arith.mulf %163, %10 : vector<13x13xf32>
    %165 = arith.addf %149, %164 : vector<13x13xf32>
    %c0_70 = arith.constant 0 : index
    %c9 = arith.constant 9 : index
    %166 = memref.load %arg2[%c0_70, %c9] : memref<4x16xf32, #tpu.memory_space<smem>>
    %167 = vector.broadcast %166 : f32 to vector<13x13xf32>
    %168 = arith.mulf %167, %11 : vector<13x13xf32>
    %169 = arith.addf %153, %168 : vector<13x13xf32>
    %c1_71 = arith.constant 1 : index
    %c9_72 = arith.constant 9 : index
    %170 = memref.load %arg2[%c1_71, %c9_72] : memref<4x16xf32, #tpu.memory_space<smem>>
    %171 = vector.broadcast %170 : f32 to vector<13x13xf32>
    %172 = arith.mulf %171, %11 : vector<13x13xf32>
    %173 = arith.addf %157, %172 : vector<13x13xf32>
    %c2_73 = arith.constant 2 : index
    %c9_74 = arith.constant 9 : index
    %174 = memref.load %arg2[%c2_73, %c9_74] : memref<4x16xf32, #tpu.memory_space<smem>>
    %175 = vector.broadcast %174 : f32 to vector<13x13xf32>
    %176 = arith.mulf %175, %11 : vector<13x13xf32>
    %177 = arith.addf %161, %176 : vector<13x13xf32>
    %c3_75 = arith.constant 3 : index
    %c9_76 = arith.constant 9 : index
    %178 = memref.load %arg2[%c3_75, %c9_76] : memref<4x16xf32, #tpu.memory_space<smem>>
    %179 = vector.broadcast %178 : f32 to vector<13x13xf32>
    %180 = arith.mulf %179, %11 : vector<13x13xf32>
    %181 = arith.addf %165, %180 : vector<13x13xf32>
    %c0_77 = arith.constant 0 : index
    %c10 = arith.constant 10 : index
    %182 = memref.load %arg2[%c0_77, %c10] : memref<4x16xf32, #tpu.memory_space<smem>>
    %183 = vector.broadcast %182 : f32 to vector<13x13xf32>
    %184 = arith.mulf %183, %12 : vector<13x13xf32>
    %185 = arith.addf %169, %184 : vector<13x13xf32>
    %c1_78 = arith.constant 1 : index
    %c10_79 = arith.constant 10 : index
    %186 = memref.load %arg2[%c1_78, %c10_79] : memref<4x16xf32, #tpu.memory_space<smem>>
    %187 = vector.broadcast %186 : f32 to vector<13x13xf32>
    %188 = arith.mulf %187, %12 : vector<13x13xf32>
    %189 = arith.addf %173, %188 : vector<13x13xf32>
    %c2_80 = arith.constant 2 : index
    %c10_81 = arith.constant 10 : index
    %190 = memref.load %arg2[%c2_80, %c10_81] : memref<4x16xf32, #tpu.memory_space<smem>>
    %191 = vector.broadcast %190 : f32 to vector<13x13xf32>
    %192 = arith.mulf %191, %12 : vector<13x13xf32>
    %193 = arith.addf %177, %192 : vector<13x13xf32>
    %c3_82 = arith.constant 3 : index
    %c10_83 = arith.constant 10 : index
    %194 = memref.load %arg2[%c3_82, %c10_83] : memref<4x16xf32, #tpu.memory_space<smem>>
    %195 = vector.broadcast %194 : f32 to vector<13x13xf32>
    %196 = arith.mulf %195, %12 : vector<13x13xf32>
    %197 = arith.addf %181, %196 : vector<13x13xf32>
    %c0_84 = arith.constant 0 : index
    %c11 = arith.constant 11 : index
    %198 = memref.load %arg2[%c0_84, %c11] : memref<4x16xf32, #tpu.memory_space<smem>>
    %199 = vector.broadcast %198 : f32 to vector<13x13xf32>
    %200 = arith.mulf %199, %13 : vector<13x13xf32>
    %201 = arith.addf %185, %200 : vector<13x13xf32>
    %c1_85 = arith.constant 1 : index
    %c11_86 = arith.constant 11 : index
    %202 = memref.load %arg2[%c1_85, %c11_86] : memref<4x16xf32, #tpu.memory_space<smem>>
    %203 = vector.broadcast %202 : f32 to vector<13x13xf32>
    %204 = arith.mulf %203, %13 : vector<13x13xf32>
    %205 = arith.addf %189, %204 : vector<13x13xf32>
    %c2_87 = arith.constant 2 : index
    %c11_88 = arith.constant 11 : index
    %206 = memref.load %arg2[%c2_87, %c11_88] : memref<4x16xf32, #tpu.memory_space<smem>>
    %207 = vector.broadcast %206 : f32 to vector<13x13xf32>
    %208 = arith.mulf %207, %13 : vector<13x13xf32>
    %209 = arith.addf %193, %208 : vector<13x13xf32>
    %c3_89 = arith.constant 3 : index
    %c11_90 = arith.constant 11 : index
    %210 = memref.load %arg2[%c3_89, %c11_90] : memref<4x16xf32, #tpu.memory_space<smem>>
    %211 = vector.broadcast %210 : f32 to vector<13x13xf32>
    %212 = arith.mulf %211, %13 : vector<13x13xf32>
    %213 = arith.addf %197, %212 : vector<13x13xf32>
    %c0_91 = arith.constant 0 : index
    %c12 = arith.constant 12 : index
    %214 = memref.load %arg2[%c0_91, %c12] : memref<4x16xf32, #tpu.memory_space<smem>>
    %215 = vector.broadcast %214 : f32 to vector<13x13xf32>
    %216 = arith.mulf %215, %14 : vector<13x13xf32>
    %217 = arith.addf %201, %216 : vector<13x13xf32>
    %c1_92 = arith.constant 1 : index
    %c12_93 = arith.constant 12 : index
    %218 = memref.load %arg2[%c1_92, %c12_93] : memref<4x16xf32, #tpu.memory_space<smem>>
    %219 = vector.broadcast %218 : f32 to vector<13x13xf32>
    %220 = arith.mulf %219, %14 : vector<13x13xf32>
    %221 = arith.addf %205, %220 : vector<13x13xf32>
    %c2_94 = arith.constant 2 : index
    %c12_95 = arith.constant 12 : index
    %222 = memref.load %arg2[%c2_94, %c12_95] : memref<4x16xf32, #tpu.memory_space<smem>>
    %223 = vector.broadcast %222 : f32 to vector<13x13xf32>
    %224 = arith.mulf %223, %14 : vector<13x13xf32>
    %225 = arith.addf %209, %224 : vector<13x13xf32>
    %c3_96 = arith.constant 3 : index
    %c12_97 = arith.constant 12 : index
    %226 = memref.load %arg2[%c3_96, %c12_97] : memref<4x16xf32, #tpu.memory_space<smem>>
    %227 = vector.broadcast %226 : f32 to vector<13x13xf32>
    %228 = arith.mulf %227, %14 : vector<13x13xf32>
    %229 = arith.addf %213, %228 : vector<13x13xf32>
    %c0_98 = arith.constant 0 : index
    %c13 = arith.constant 13 : index
    %230 = memref.load %arg2[%c0_98, %c13] : memref<4x16xf32, #tpu.memory_space<smem>>
    %231 = vector.broadcast %230 : f32 to vector<13x13xf32>
    %232 = arith.mulf %231, %15 : vector<13x13xf32>
    %233 = arith.addf %217, %232 : vector<13x13xf32>
    %c1_99 = arith.constant 1 : index
    %c13_100 = arith.constant 13 : index
    %234 = memref.load %arg2[%c1_99, %c13_100] : memref<4x16xf32, #tpu.memory_space<smem>>
    %235 = vector.broadcast %234 : f32 to vector<13x13xf32>
    %236 = arith.mulf %235, %15 : vector<13x13xf32>
    %237 = arith.addf %221, %236 : vector<13x13xf32>
    %c2_101 = arith.constant 2 : index
    %c13_102 = arith.constant 13 : index
    %238 = memref.load %arg2[%c2_101, %c13_102] : memref<4x16xf32, #tpu.memory_space<smem>>
    %239 = vector.broadcast %238 : f32 to vector<13x13xf32>
    %240 = arith.mulf %239, %15 : vector<13x13xf32>
    %241 = arith.addf %225, %240 : vector<13x13xf32>
    %c3_103 = arith.constant 3 : index
    %c13_104 = arith.constant 13 : index
    %242 = memref.load %arg2[%c3_103, %c13_104] : memref<4x16xf32, #tpu.memory_space<smem>>
    %243 = vector.broadcast %242 : f32 to vector<13x13xf32>
    %244 = arith.mulf %243, %15 : vector<13x13xf32>
    %245 = arith.addf %229, %244 : vector<13x13xf32>
    %c0_105 = arith.constant 0 : index
    %c14 = arith.constant 14 : index
    %246 = memref.load %arg2[%c0_105, %c14] : memref<4x16xf32, #tpu.memory_space<smem>>
    %247 = vector.broadcast %246 : f32 to vector<13x13xf32>
    %248 = arith.mulf %247, %16 : vector<13x13xf32>
    %249 = arith.addf %233, %248 : vector<13x13xf32>
    %c1_106 = arith.constant 1 : index
    %c14_107 = arith.constant 14 : index
    %250 = memref.load %arg2[%c1_106, %c14_107] : memref<4x16xf32, #tpu.memory_space<smem>>
    %251 = vector.broadcast %250 : f32 to vector<13x13xf32>
    %252 = arith.mulf %251, %16 : vector<13x13xf32>
    %253 = arith.addf %237, %252 : vector<13x13xf32>
    %c2_108 = arith.constant 2 : index
    %c14_109 = arith.constant 14 : index
    %254 = memref.load %arg2[%c2_108, %c14_109] : memref<4x16xf32, #tpu.memory_space<smem>>
    %255 = vector.broadcast %254 : f32 to vector<13x13xf32>
    %256 = arith.mulf %255, %16 : vector<13x13xf32>
    %257 = arith.addf %241, %256 : vector<13x13xf32>
    %c3_110 = arith.constant 3 : index
    %c14_111 = arith.constant 14 : index
    %258 = memref.load %arg2[%c3_110, %c14_111] : memref<4x16xf32, #tpu.memory_space<smem>>
    %259 = vector.broadcast %258 : f32 to vector<13x13xf32>
    %260 = arith.mulf %259, %16 : vector<13x13xf32>
    %261 = arith.addf %245, %260 : vector<13x13xf32>
    %c0_112 = arith.constant 0 : index
    %c15 = arith.constant 15 : index
    %262 = memref.load %arg2[%c0_112, %c15] : memref<4x16xf32, #tpu.memory_space<smem>>
    %263 = vector.broadcast %262 : f32 to vector<13x13xf32>
    %264 = arith.mulf %263, %17 : vector<13x13xf32>
    %265 = arith.addf %249, %264 : vector<13x13xf32>
    %c1_113 = arith.constant 1 : index
    %c15_114 = arith.constant 15 : index
    %266 = memref.load %arg2[%c1_113, %c15_114] : memref<4x16xf32, #tpu.memory_space<smem>>
    %267 = vector.broadcast %266 : f32 to vector<13x13xf32>
    %268 = arith.mulf %267, %17 : vector<13x13xf32>
    %269 = arith.addf %253, %268 : vector<13x13xf32>
    %c2_115 = arith.constant 2 : index
    %c15_116 = arith.constant 15 : index
    %270 = memref.load %arg2[%c2_115, %c15_116] : memref<4x16xf32, #tpu.memory_space<smem>>
    %271 = vector.broadcast %270 : f32 to vector<13x13xf32>
    %272 = arith.mulf %271, %17 : vector<13x13xf32>
    %273 = arith.addf %257, %272 : vector<13x13xf32>
    %c3_117 = arith.constant 3 : index
    %c15_118 = arith.constant 15 : index
    %274 = memref.load %arg2[%c3_117, %c15_118] : memref<4x16xf32, #tpu.memory_space<smem>>
    %275 = vector.broadcast %274 : f32 to vector<13x13xf32>
    %276 = arith.mulf %275, %17 : vector<13x13xf32>
    %277 = arith.addf %261, %276 : vector<13x13xf32>
    %c0_119 = arith.constant 0 : index
    %c0_120 = arith.constant 0 : index
    %c0_121 = arith.constant 0 : index
    %c0_122 = arith.constant 0 : index
    %278 = vector.load %arg3[%c0_119, %c0_120, %c0_121, %c0_122] : memref<1x4x13x13xf32, #tpu.memory_space<vmem>>, vector<1x1x13x13xf32>
    %279 = vector.shape_cast %278 : vector<1x1x13x13xf32> to vector<13x13xf32>
    %280 = vector.shape_cast %265 : vector<13x13xf32> to vector<1x1x13x13xf32>
    tpu.vector_store %arg3[%c0_119, %c0_120, %c0_121, %c0_122], %280 {strides = array<i32>} : memref<1x4x13x13xf32, #tpu.memory_space<vmem>>, vector<1x1x13x13xf32>,
    %cst_123 = arith.constant 0.000000e+00 : f32
    %281 = vector.broadcast %cst_123 : f32 to vector<13x13xf32>
    %282 = arith.maximumf %265, %281 : vector<13x13xf32>
    %c0_124 = arith.constant 0 : index
    %c0_125 = arith.constant 0 : index
    %c0_126 = arith.constant 0 : index
    %c0_127 = arith.constant 0 : index
    %283 = vector.load %arg4[%c0_124, %c0_125, %c0_126, %c0_127] : memref<1x4x13x13xf32, #tpu.memory_space<vmem>>, vector<1x1x13x13xf32>
    %284 = vector.shape_cast %283 : vector<1x1x13x13xf32> to vector<13x13xf32>
    %285 = vector.shape_cast %282 : vector<13x13xf32> to vector<1x1x13x13xf32>
    tpu.vector_store %arg4[%c0_124, %c0_125, %c0_126, %c0_127], %285 {strides = array<i32>} : memref<1x4x13x13xf32, #tpu.memory_space<vmem>>, vector<1x1x13x13xf32>,
    %286 = vector.extract_strided_slice %282 {offsets = [0, 0], sizes = [4, 13], strides = [1, 1]} : vector<13x13xf32> to vector<4x13xf32>
    %cst_128 = arith.constant dense<0xFF800000> : vector<13xf32>
    %287 = vector.multi_reduction <maximumf>, %286, %cst_128 [0] : vector<4x13xf32> to vector<13xf32>
    %288 = vector.shape_cast %287 : vector<13xf32> to vector<1x13xf32>
    %289 = vector.extract_strided_slice %282 {offsets = [4, 0], sizes = [4, 13], strides = [1, 1]} : vector<13x13xf32> to vector<4x13xf32>
    %cst_129 = arith.constant dense<0xFF800000> : vector<13xf32>
    %290 = vector.multi_reduction <maximumf>, %289, %cst_129 [0] : vector<4x13xf32> to vector<13xf32>
    %291 = vector.shape_cast %290 : vector<13xf32> to vector<1x13xf32>
    %292 = vector.extract_strided_slice %282 {offsets = [8, 0], sizes = [4, 13], strides = [1, 1]} : vector<13x13xf32> to vector<4x13xf32>
    %cst_130 = arith.constant dense<0xFF800000> : vector<13xf32>
    %293 = vector.multi_reduction <maximumf>, %292, %cst_130 [0] : vector<4x13xf32> to vector<13xf32>
    %294 = vector.shape_cast %293 : vector<13xf32> to vector<1x13xf32>
    %295 = tpu.concatenate %288, %291, %294 in 0 : vector<1x13xf32>, vector<1x13xf32>, vector<1x13xf32> -> vector<3x13xf32>
    %296 = vector.extract_strided_slice %295 {offsets = [0, 0], sizes = [3, 4], strides = [1, 1]} : vector<3x13xf32> to vector<3x4xf32>
    %cst_131 = arith.constant dense<0xFF800000> : vector<3xf32>
    %297 = vector.multi_reduction <maximumf>, %296, %cst_131 [1] : vector<3x4xf32> to vector<3xf32>
    %298 = vector.shape_cast %297 : vector<3xf32> to vector<3x1xf32>
    %299 = vector.extract_strided_slice %295 {offsets = [0, 4], sizes = [3, 4], strides = [1, 1]} : vector<3x13xf32> to vector<3x4xf32>
    %cst_132 = arith.constant dense<0xFF800000> : vector<3xf32>
    %300 = vector.multi_reduction <maximumf>, %299, %cst_132 [1] : vector<3x4xf32> to vector<3xf32>
    %301 = vector.shape_cast %300 : vector<3xf32> to vector<3x1xf32>
    %302 = vector.extract_strided_slice %295 {offsets = [0, 8], sizes = [3, 4], strides = [1, 1]} : vector<3x13xf32> to vector<3x4xf32>
    %cst_133 = arith.constant dense<0xFF800000> : vector<3xf32>
    %303 = vector.multi_reduction <maximumf>, %302, %cst_133 [1] : vector<3x4xf32> to vector<3xf32>
    %304 = vector.shape_cast %303 : vector<3xf32> to vector<3x1xf32>
    %305 = tpu.concatenate %298, %301, %304 in 1 : vector<3x1xf32>, vector<3x1xf32>, vector<3x1xf32> -> vector<3x3xf32>
    %c0_134 = arith.constant 0 : index
    %c0_135 = arith.constant 0 : index
    %c0_136 = arith.constant 0 : index
    %c0_137 = arith.constant 0 : index
    %306 = vector.load %arg5[%c0_134, %c0_135, %c0_136, %c0_137] : memref<1x4x3x3xf32, #tpu.memory_space<vmem>>, vector<1x1x3x3xf32>
    %307 = vector.shape_cast %306 : vector<1x1x3x3xf32> to vector<3x3xf32>
    %308 = vector.shape_cast %305 : vector<3x3xf32> to vector<1x1x3x3xf32>
    tpu.vector_store %arg5[%c0_134, %c0_135, %c0_136, %c0_137], %308 {strides = array<i32>} : memref<1x4x3x3xf32, #tpu.memory_space<vmem>>, vector<1x1x3x3xf32>,
    %c0_138 = arith.constant 0 : index
    %c1_139 = arith.constant 1 : index
    %c0_140 = arith.constant 0 : index
    %c0_141 = arith.constant 0 : index
    %309 = vector.load %arg3[%c0_138, %c1_139, %c0_140, %c0_141] : memref<1x4x13x13xf32, #tpu.memory_space<vmem>>, vector<1x1x13x13xf32>
    %310 = vector.shape_cast %309 : vector<1x1x13x13xf32> to vector<13x13xf32>
    %311 = vector.shape_cast %269 : vector<13x13xf32> to vector<1x1x13x13xf32>
    tpu.vector_store %arg3[%c0_138, %c1_139, %c0_140, %c0_141], %311 {strides = array<i32>} : memref<1x4x13x13xf32, #tpu.memory_space<vmem>>, vector<1x1x13x13xf32>,
    %cst_142 = arith.constant 0.000000e+00 : f32
    %312 = vector.broadcast %cst_142 : f32 to vector<13x13xf32>
    %313 = arith.maximumf %269, %312 : vector<13x13xf32>
    %c0_143 = arith.constant 0 : index
    %c1_144 = arith.constant 1 : index
    %c0_145 = arith.constant 0 : index
    %c0_146 = arith.constant 0 : index
    %314 = vector.load %arg4[%c0_143, %c1_144, %c0_145, %c0_146] : memref<1x4x13x13xf32, #tpu.memory_space<vmem>>, vector<1x1x13x13xf32>
    %315 = vector.shape_cast %314 : vector<1x1x13x13xf32> to vector<13x13xf32>
    %316 = vector.shape_cast %313 : vector<13x13xf32> to vector<1x1x13x13xf32>
    tpu.vector_store %arg4[%c0_143, %c1_144, %c0_145, %c0_146], %316 {strides = array<i32>} : memref<1x4x13x13xf32, #tpu.memory_space<vmem>>, vector<1x1x13x13xf32>,
    %317 = vector.extract_strided_slice %313 {offsets = [0, 0], sizes = [4, 13], strides = [1, 1]} : vector<13x13xf32> to vector<4x13xf32>
    %cst_147 = arith.constant dense<0xFF800000> : vector<13xf32>
    %318 = vector.multi_reduction <maximumf>, %317, %cst_147 [0] : vector<4x13xf32> to vector<13xf32>
    %319 = vector.shape_cast %318 : vector<13xf32> to vector<1x13xf32>
    %320 = vector.extract_strided_slice %313 {offsets = [4, 0], sizes = [4, 13], strides = [1, 1]} : vector<13x13xf32> to vector<4x13xf32>
    %cst_148 = arith.constant dense<0xFF800000> : vector<13xf32>
    %321 = vector.multi_reduction <maximumf>, %320, %cst_148 [0] : vector<4x13xf32> to vector<13xf32>
    %322 = vector.shape_cast %321 : vector<13xf32> to vector<1x13xf32>
    %323 = vector.extract_strided_slice %313 {offsets = [8, 0], sizes = [4, 13], strides = [1, 1]} : vector<13x13xf32> to vector<4x13xf32>
    %cst_149 = arith.constant dense<0xFF800000> : vector<13xf32>
    %324 = vector.multi_reduction <maximumf>, %323, %cst_149 [0] : vector<4x13xf32> to vector<13xf32>
    %325 = vector.shape_cast %324 : vector<13xf32> to vector<1x13xf32>
    %326 = tpu.concatenate %319, %322, %325 in 0 : vector<1x13xf32>, vector<1x13xf32>, vector<1x13xf32> -> vector<3x13xf32>
    %327 = vector.extract_strided_slice %326 {offsets = [0, 0], sizes = [3, 4], strides = [1, 1]} : vector<3x13xf32> to vector<3x4xf32>
    %cst_150 = arith.constant dense<0xFF800000> : vector<3xf32>
    %328 = vector.multi_reduction <maximumf>, %327, %cst_150 [1] : vector<3x4xf32> to vector<3xf32>
    %329 = vector.shape_cast %328 : vector<3xf32> to vector<3x1xf32>
    %330 = vector.extract_strided_slice %326 {offsets = [0, 4], sizes = [3, 4], strides = [1, 1]} : vector<3x13xf32> to vector<3x4xf32>
    %cst_151 = arith.constant dense<0xFF800000> : vector<3xf32>
    %331 = vector.multi_reduction <maximumf>, %330, %cst_151 [1] : vector<3x4xf32> to vector<3xf32>
    %332 = vector.shape_cast %331 : vector<3xf32> to vector<3x1xf32>
    %333 = vector.extract_strided_slice %326 {offsets = [0, 8], sizes = [3, 4], strides = [1, 1]} : vector<3x13xf32> to vector<3x4xf32>
    %cst_152 = arith.constant dense<0xFF800000> : vector<3xf32>
    %334 = vector.multi_reduction <maximumf>, %333, %cst_152 [1] : vector<3x4xf32> to vector<3xf32>
    %335 = vector.shape_cast %334 : vector<3xf32> to vector<3x1xf32>
    %336 = tpu.concatenate %329, %332, %335 in 1 : vector<3x1xf32>, vector<3x1xf32>, vector<3x1xf32> -> vector<3x3xf32>
    %c0_153 = arith.constant 0 : index
    %c1_154 = arith.constant 1 : index
    %c0_155 = arith.constant 0 : index
    %c0_156 = arith.constant 0 : index
    %337 = vector.load %arg5[%c0_153, %c1_154, %c0_155, %c0_156] : memref<1x4x3x3xf32, #tpu.memory_space<vmem>>, vector<1x1x3x3xf32>
    %338 = vector.shape_cast %337 : vector<1x1x3x3xf32> to vector<3x3xf32>
    %339 = vector.shape_cast %336 : vector<3x3xf32> to vector<1x1x3x3xf32>
    tpu.vector_store %arg5[%c0_153, %c1_154, %c0_155, %c0_156], %339 {strides = array<i32>} : memref<1x4x3x3xf32, #tpu.memory_space<vmem>>, vector<1x1x3x3xf32>,
    %c0_157 = arith.constant 0 : index
    %c2_158 = arith.constant 2 : index
    %c0_159 = arith.constant 0 : index
    %c0_160 = arith.constant 0 : index
    %340 = vector.load %arg3[%c0_157, %c2_158, %c0_159, %c0_160] : memref<1x4x13x13xf32, #tpu.memory_space<vmem>>, vector<1x1x13x13xf32>
    %341 = vector.shape_cast %340 : vector<1x1x13x13xf32> to vector<13x13xf32>
    %342 = vector.shape_cast %273 : vector<13x13xf32> to vector<1x1x13x13xf32>
    tpu.vector_store %arg3[%c0_157, %c2_158, %c0_159, %c0_160], %342 {strides = array<i32>} : memref<1x4x13x13xf32, #tpu.memory_space<vmem>>, vector<1x1x13x13xf32>,
    %cst_161 = arith.constant 0.000000e+00 : f32
    %343 = vector.broadcast %cst_161 : f32 to vector<13x13xf32>
    %344 = arith.maximumf %273, %343 : vector<13x13xf32>
    %c0_162 = arith.constant 0 : index
    %c2_163 = arith.constant 2 : index
    %c0_164 = arith.constant 0 : index
    %c0_165 = arith.constant 0 : index
    %345 = vector.load %arg4[%c0_162, %c2_163, %c0_164, %c0_165] : memref<1x4x13x13xf32, #tpu.memory_space<vmem>>, vector<1x1x13x13xf32>
    %346 = vector.shape_cast %345 : vector<1x1x13x13xf32> to vector<13x13xf32>
    %347 = vector.shape_cast %344 : vector<13x13xf32> to vector<1x1x13x13xf32>
    tpu.vector_store %arg4[%c0_162, %c2_163, %c0_164, %c0_165], %347 {strides = array<i32>} : memref<1x4x13x13xf32, #tpu.memory_space<vmem>>, vector<1x1x13x13xf32>,
    %348 = vector.extract_strided_slice %344 {offsets = [0, 0], sizes = [4, 13], strides = [1, 1]} : vector<13x13xf32> to vector<4x13xf32>
    %cst_166 = arith.constant dense<0xFF800000> : vector<13xf32>
    %349 = vector.multi_reduction <maximumf>, %348, %cst_166 [0] : vector<4x13xf32> to vector<13xf32>
    %350 = vector.shape_cast %349 : vector<13xf32> to vector<1x13xf32>
    %351 = vector.extract_strided_slice %344 {offsets = [4, 0], sizes = [4, 13], strides = [1, 1]} : vector<13x13xf32> to vector<4x13xf32>
    %cst_167 = arith.constant dense<0xFF800000> : vector<13xf32>
    %352 = vector.multi_reduction <maximumf>, %351, %cst_167 [0] : vector<4x13xf32> to vector<13xf32>
    %353 = vector.shape_cast %352 : vector<13xf32> to vector<1x13xf32>
    %354 = vector.extract_strided_slice %344 {offsets = [8, 0], sizes = [4, 13], strides = [1, 1]} : vector<13x13xf32> to vector<4x13xf32>
    %cst_168 = arith.constant dense<0xFF800000> : vector<13xf32>
    %355 = vector.multi_reduction <maximumf>, %354, %cst_168 [0] : vector<4x13xf32> to vector<13xf32>
    %356 = vector.shape_cast %355 : vector<13xf32> to vector<1x13xf32>
    %357 = tpu.concatenate %350, %353, %356 in 0 : vector<1x13xf32>, vector<1x13xf32>, vector<1x13xf32> -> vector<3x13xf32>
    %358 = vector.extract_strided_slice %357 {offsets = [0, 0], sizes = [3, 4], strides = [1, 1]} : vector<3x13xf32> to vector<3x4xf32>
    %cst_169 = arith.constant dense<0xFF800000> : vector<3xf32>
    %359 = vector.multi_reduction <maximumf>, %358, %cst_169 [1] : vector<3x4xf32> to vector<3xf32>
    %360 = vector.shape_cast %359 : vector<3xf32> to vector<3x1xf32>
    %361 = vector.extract_strided_slice %357 {offsets = [0, 4], sizes = [3, 4], strides = [1, 1]} : vector<3x13xf32> to vector<3x4xf32>
    %cst_170 = arith.constant dense<0xFF800000> : vector<3xf32>
    %362 = vector.multi_reduction <maximumf>, %361, %cst_170 [1] : vector<3x4xf32> to vector<3xf32>
    %363 = vector.shape_cast %362 : vector<3xf32> to vector<3x1xf32>
    %364 = vector.extract_strided_slice %357 {offsets = [0, 8], sizes = [3, 4], strides = [1, 1]} : vector<3x13xf32> to vector<3x4xf32>
    %cst_171 = arith.constant dense<0xFF800000> : vector<3xf32>
    %365 = vector.multi_reduction <maximumf>, %364, %cst_171 [1] : vector<3x4xf32> to vector<3xf32>
    %366 = vector.shape_cast %365 : vector<3xf32> to vector<3x1xf32>
    %367 = tpu.concatenate %360, %363, %366 in 1 : vector<3x1xf32>, vector<3x1xf32>, vector<3x1xf32> -> vector<3x3xf32>
    %c0_172 = arith.constant 0 : index
    %c2_173 = arith.constant 2 : index
    %c0_174 = arith.constant 0 : index
    %c0_175 = arith.constant 0 : index
    %368 = vector.load %arg5[%c0_172, %c2_173, %c0_174, %c0_175] : memref<1x4x3x3xf32, #tpu.memory_space<vmem>>, vector<1x1x3x3xf32>
    %369 = vector.shape_cast %368 : vector<1x1x3x3xf32> to vector<3x3xf32>
    %370 = vector.shape_cast %367 : vector<3x3xf32> to vector<1x1x3x3xf32>
    tpu.vector_store %arg5[%c0_172, %c2_173, %c0_174, %c0_175], %370 {strides = array<i32>} : memref<1x4x3x3xf32, #tpu.memory_space<vmem>>, vector<1x1x3x3xf32>,
    %c0_176 = arith.constant 0 : index
    %c3_177 = arith.constant 3 : index
    %c0_178 = arith.constant 0 : index
    %c0_179 = arith.constant 0 : index
    %371 = vector.load %arg3[%c0_176, %c3_177, %c0_178, %c0_179] : memref<1x4x13x13xf32, #tpu.memory_space<vmem>>, vector<1x1x13x13xf32>
    %372 = vector.shape_cast %371 : vector<1x1x13x13xf32> to vector<13x13xf32>
    %373 = vector.shape_cast %277 : vector<13x13xf32> to vector<1x1x13x13xf32>
    tpu.vector_store %arg3[%c0_176, %c3_177, %c0_178, %c0_179], %373 {strides = array<i32>} : memref<1x4x13x13xf32, #tpu.memory_space<vmem>>, vector<1x1x13x13xf32>,
    %cst_180 = arith.constant 0.000000e+00 : f32
    %374 = vector.broadcast %cst_180 : f32 to vector<13x13xf32>
    %375 = arith.maximumf %277, %374 : vector<13x13xf32>
    %c0_181 = arith.constant 0 : index
    %c3_182 = arith.constant 3 : index
    %c0_183 = arith.constant 0 : index
    %c0_184 = arith.constant 0 : index
    %376 = vector.load %arg4[%c0_181, %c3_182, %c0_183, %c0_184] : memref<1x4x13x13xf32, #tpu.memory_space<vmem>>, vector<1x1x13x13xf32>
    %377 = vector.shape_cast %376 : vector<1x1x13x13xf32> to vector<13x13xf32>
    %378 = vector.shape_cast %375 : vector<13x13xf32> to vector<1x1x13x13xf32>
    tpu.vector_store %arg4[%c0_181, %c3_182, %c0_183, %c0_184], %378 {strides = array<i32>} : memref<1x4x13x13xf32, #tpu.memory_space<vmem>>, vector<1x1x13x13xf32>,
    %379 = vector.extract_strided_slice %375 {offsets = [0, 0], sizes = [4, 13], strides = [1, 1]} : vector<13x13xf32> to vector<4x13xf32>
    %cst_185 = arith.constant dense<0xFF800000> : vector<13xf32>
    %380 = vector.multi_reduction <maximumf>, %379, %cst_185 [0] : vector<4x13xf32> to vector<13xf32>
    %381 = vector.shape_cast %380 : vector<13xf32> to vector<1x13xf32>
    %382 = vector.extract_strided_slice %375 {offsets = [4, 0], sizes = [4, 13], strides = [1, 1]} : vector<13x13xf32> to vector<4x13xf32>
    %cst_186 = arith.constant dense<0xFF800000> : vector<13xf32>
    %383 = vector.multi_reduction <maximumf>, %382, %cst_186 [0] : vector<4x13xf32> to vector<13xf32>
    %384 = vector.shape_cast %383 : vector<13xf32> to vector<1x13xf32>
    %385 = vector.extract_strided_slice %375 {offsets = [8, 0], sizes = [4, 13], strides = [1, 1]} : vector<13x13xf32> to vector<4x13xf32>
    %cst_187 = arith.constant dense<0xFF800000> : vector<13xf32>
    %386 = vector.multi_reduction <maximumf>, %385, %cst_187 [0] : vector<4x13xf32> to vector<13xf32>
    %387 = vector.shape_cast %386 : vector<13xf32> to vector<1x13xf32>
    %388 = tpu.concatenate %381, %384, %387 in 0 : vector<1x13xf32>, vector<1x13xf32>, vector<1x13xf32> -> vector<3x13xf32>
    %389 = vector.extract_strided_slice %388 {offsets = [0, 0], sizes = [3, 4], strides = [1, 1]} : vector<3x13xf32> to vector<3x4xf32>
    %cst_188 = arith.constant dense<0xFF800000> : vector<3xf32>
    %390 = vector.multi_reduction <maximumf>, %389, %cst_188 [1] : vector<3x4xf32> to vector<3xf32>
    %391 = vector.shape_cast %390 : vector<3xf32> to vector<3x1xf32>
    %392 = vector.extract_strided_slice %388 {offsets = [0, 4], sizes = [3, 4], strides = [1, 1]} : vector<3x13xf32> to vector<3x4xf32>
    %cst_189 = arith.constant dense<0xFF800000> : vector<3xf32>
    %393 = vector.multi_reduction <maximumf>, %392, %cst_189 [1] : vector<3x4xf32> to vector<3xf32>
    %394 = vector.shape_cast %393 : vector<3xf32> to vector<3x1xf32>
    %395 = vector.extract_strided_slice %388 {offsets = [0, 8], sizes = [3, 4], strides = [1, 1]} : vector<3x13xf32> to vector<3x4xf32>
    %cst_190 = arith.constant dense<0xFF800000> : vector<3xf32>
    %396 = vector.multi_reduction <maximumf>, %395, %cst_190 [1] : vector<3x4xf32> to vector<3xf32>
    %397 = vector.shape_cast %396 : vector<3xf32> to vector<3x1xf32>
    %398 = tpu.concatenate %391, %394, %397 in 1 : vector<3x1xf32>, vector<3x1xf32>, vector<3x1xf32> -> vector<3x3xf32>
    %c0_191 = arith.constant 0 : index
    %c3_192 = arith.constant 3 : index
    %c0_193 = arith.constant 0 : index
    %c0_194 = arith.constant 0 : index
    %399 = vector.load %arg5[%c0_191, %c3_192, %c0_193, %c0_194] : memref<1x4x3x3xf32, #tpu.memory_space<vmem>>, vector<1x1x3x3xf32>
    %400 = vector.shape_cast %399 : vector<1x1x3x3xf32> to vector<3x3xf32>
    %401 = vector.shape_cast %398 : vector<3x3xf32> to vector<1x1x3x3xf32>
    tpu.vector_store %arg5[%c0_191, %c3_192, %c0_193, %c0_194], %401 {strides = array<i32>} : memref<1x4x3x3xf32, #tpu.memory_space<vmem>>, vector<1x1x3x3xf32>,
    return
  }
  func.func @transform_0(%arg0: i32) -> (i32, i32, i32, i32) {
    %c0_i32 = arith.constant 0 : i32
    %c0_i32_0 = arith.constant 0 : i32
    %c0_i32_1 = arith.constant 0 : i32
    %c0_i32_2 = arith.constant 0 : i32
    return %arg0, %c0_i32, %c0_i32_0, %c0_i32_1 : i32, i32, i32, i32
  }
  func.func @transform_1(%arg0: i32) -> (i32, i32) {
    %c0_i32 = arith.constant 0 : i32
    %c0_i32_0 = arith.constant 0 : i32
    %c0_i32_1 = arith.constant 0 : i32
    return %c0_i32, %c0_i32_0 : i32, i32
  }
  func.func @transform_2(%arg0: i32) -> (i32, i32, i32, i32) {
    %c0_i32 = arith.constant 0 : i32
    %c0_i32_0 = arith.constant 0 : i32
    %c0_i32_1 = arith.constant 0 : i32
    %c0_i32_2 = arith.constant 0 : i32
    return %arg0, %c0_i32, %c0_i32_0, %c0_i32_1 : i32, i32, i32, i32
  }
  func.func @transform_3(%arg0: i32) -> (i32, i32, i32, i32) {
    %c0_i32 = arith.constant 0 : i32
    %c0_i32_0 = arith.constant 0 : i32
    %c0_i32_1 = arith.constant 0 : i32
    %c0_i32_2 = arith.constant 0 : i32
    return %arg0, %c0_i32, %c0_i32_0, %c0_i32_1 : i32, i32, i32, i32
  }
  func.func @transform_4(%arg0: i32) -> (i32, i32, i32, i32) {
    %c0_i32 = arith.constant 0 : i32
    %c0_i32_0 = arith.constant 0 : i32
    %c0_i32_1 = arith.constant 0 : i32
    %c0_i32_2 = arith.constant 0 : i32
    return %arg0, %c0_i32, %c0_i32_0, %c0_i32_1 : i32, i32, i32, i32
  }
}

</mosaic_0001>

<llo_original>
// kernel: tpu_custom_call.1
$region0: #{tpu_custom_call.1}
  #allocation0 [shape = 'u32[]', space=smem, size = 0x4, offset = 0x4, fixed_abs, tag = 'smem constant byte address 0x4 - core index']
  #allocation1 [shape = 'u32[144,128]{1,0:T(1,128)}', space=vmem, size = 0x12000, scoped, tag = 'internal scratch']
  %s0 = inlined_call_operand.hbm [shape: f32[2,1,16,16], index: 0, kind: input, shape index: {}]
  %s1 = inlined_call_operand.hbm [shape: f32[4,16], index: 1, kind: input, shape index: {}]
  %s2 = inlined_call_operand.vmem [shape: f32[2,4,13,13], index: 2, kind: output, shape index: {0}]
  %s3 = inlined_call_operand.vmem [shape: f32[2,4,13,13], index: 3, kind: output, shape index: {1}]
  %s4 = inlined_call_operand.vmem [shape: f32[2,4,3,3], index: 4, kind: output, shape index: {2}]
  %5 = xla_tuple %s2, %s3, %s4
  %s6 = sld [smem:[#allocation0]]
  $region65: #{tpu_custom_call.1} parent=0
    _
  %s8 = ssub.s32 1, %s6
  %s9 = scalar_select 0, %s8, %s6
  $region1: #{tpu_custom_call.1} parent=0
    #allocation2 [shape = 'u8[16384]{0}', space=vmem, size = 0x4000, scoped, tag = 'input window, operand 0']
    #allocation3 [shape = 's32[2]{0}', space=sflag, size = 0x8, scoped, tag = 'scoped memory for tpu_custom_call.1']
    #allocation4 [shape = 's32[2]{0}', space=sflag, size = 0x8, scoped, tag = 'scoped memory for tpu_custom_call.1']
    #allocation5 [shape = 'u8[2048]{0}', space=smem, size = 0x800, scoped, tag = 'input window, operand 1, single buffered']
    %10 = vsyncpa [#allocation3], 0
    %s11 = scalar_lea.sflag [#allocation3], 1
    %12 = vsyncpa %s11, 0
    %13 = vsyncpa [#allocation4], 0
    loop: start=0, step=1, limit=4
    $region2: #{tpu_custom_call.1} parent=1 // loop_pre_header
      _
    $region3: #{tpu_custom_call.1} parent=1 // loop_header
      %s15 = sphi 0, %s19
      %p16 = scmp.ge.s32.totalorder %s15, 4
      %s25 = sphi 0, %s27
      %s28 = sphi 0, %s25
      %s29 = sphi 0, %s28
      %s45 = sphi 0, %s29
      %s49 = sphi 0, %s49
      %s51 = sphi 0, %s49
      %s52 = sphi 0, %s51
      %s66 = sphi 0, %s52
      %s72 = sphi 0, %s74
      %s75 = sphi 0, %s72
      %s76 = sphi 0, %s75
      %s92 = sphi 0, %s76
      %s98 = sphi 0, %s100
      %s101 = sphi 0, %s98
      %s102 = sphi 0, %s101
      %s118 = sphi 0, %s102
      %s124 = sphi 0, %s126
      %s127 = sphi 0, %s124
      %s128 = sphi 0, %s127
      %s144 = sphi 0, %s128
    $region4: #{tpu_custom_call.1} parent=1 // loop_header_branch
      %18 = sbr.rel (%p16) target = $region8
    $region5: #{tpu_custom_call.1} parent=1 // loop_body
      %s20 = ssub.s32 %s15, 1
      %s21 = ssub.s32 %s15, 2
      %s22 = sadd.s32 %s15, 1
      %s23 = ssub.s32 %s15, %s22
      %p24 = scmp.eq.s32.totalorder %s23, 0
      %s26 = sadd.s32 %s25, 1
      %s27 = scalar_select %p24, %s25, %s26
      %p30 = pneg %p24
      %p31 = scmp.eq.s32.totalorder %s15, 1
      %p32 = por %p30, %p31
      %p33 = scmp.ne.s32.totalorder %s25, %s28
      %p34 = scmp.eq.s32.totalorder %s15, 0
      %p35 = por %p33, %p34
      %p36 = scmp.ne.s32.totalorder %s25, %s28
      %p37 = scmp.eq.s32.totalorder %s20, 1
      %p38 = por %p36, %p37
      %p39 = scmp.ne.s32.totalorder %s28, %s29
      %p40 = scmp.eq.s32.totalorder %s20, 0
      %p41 = por %p39, %p40
      %p42 = scmp.ne.s32.totalorder %s28, %s29
      %p43 = scmp.eq.s32.totalorder %s21, 1
      %p44 = por %p42, %p43
      %p46 = scmp.ne.s32.totalorder %s29, %s45
      %p47 = scmp.eq.s32.totalorder %s21, 0
      %p48 = por %p46, %p47
      %s50 = sadd.s32 %s49, 1
      %p53 = scmp.eq.s32.totalorder %s15, 1
      %p54 = scmp.ne.s32.totalorder %s49, %s51
      %p55 = scmp.eq.s32.totalorder %s15, 0
      %p56 = por %p54, %p55
      %p57 = scmp.ne.s32.totalorder %s49, %s51
      %p58 = scmp.eq.s32.totalorder %s20, 1
      %p59 = por %p57, %p58
      %p60 = scmp.ne.s32.totalorder %s51, %s52
      %p61 = scmp.eq.s32.totalorder %s20, 0
      %p62 = por %p60, %p61
      %p63 = scmp.ne.s32.totalorder %s51, %s52
      %p64 = scmp.eq.s32.totalorder %s21, 1
      %p65 = por %p63, %p64
      %p67 = scmp.ne.s32.totalorder %s52, %s66
      %p68 = scmp.eq.s32.totalorder %s21, 0
      %p69 = por %p67, %p68
      %s70 = ssub.s32 %s15, %s22
      %p71 = scmp.eq.s32.totalorder %s70, 0
      %s73 = sadd.s32 %s72, 1
      %s74 = scalar_select %p71, %s72, %s73
      %p77 = pneg %p71
      %p78 = scmp.eq.s32.totalorder %s15, 1
      %p79 = por %p77, %p78
      %p80 = scmp.ne.s32.totalorder %s72, %s75
      %p81 = scmp.eq.s32.totalorder %s15, 0
      %p82 = por %p80, %p81
      %p83 = scmp.ne.s32.totalorder %s72, %s75
      %p84 = scmp.eq.s32.totalorder %s20, 1
      %p85 = por %p83, %p84
      %p86 = scmp.ne.s32.totalorder %s75, %s76
      %p87 = scmp.eq.s32.totalorder %s20, 0
      %p88 = por %p86, %p87
      %p89 = scmp.ne.s32.totalorder %s75, %s76
      %p90 = scmp.eq.s32.totalorder %s21, 1
      %p91 = por %p89, %p90
      %p93 = scmp.ne.s32.totalorder %s76, %s92
      %p94 = scmp.eq.s32.totalorder %s21, 0
      %p95 = por %p93, %p94
      %s96 = ssub.s32 %s15, %s22
      %p97 = scmp.eq.s32.totalorder %s96, 0
      %s99 = sadd.s32 %s98, 1
      %s100 = scalar_select %p97, %s98, %s99
      %p103 = pneg %p97
      %p104 = scmp.eq.s32.totalorder %s15, 1
      %p105 = por %p103, %p104
      %p106 = scmp.ne.s32.totalorder %s98, %s101
      %p107 = scmp.eq.s32.totalorder %s15, 0
      %p108 = por %p106, %p107
      %p109 = scmp.ne.s32.totalorder %s98, %s101
      %p110 = scmp.eq.s32.totalorder %s20, 1
      %p111 = por %p109, %p110
      %p112 = scmp.ne.s32.totalorder %s101, %s102
      %p113 = scmp.eq.s32.totalorder %s20, 0
      %p114 = por %p112, %p113
      %p115 = scmp.ne.s32.totalorder %s101, %s102
      %p116 = scmp.eq.s32.totalorder %s21, 1
      %p117 = por %p115, %p116
      %p119 = scmp.ne.s32.totalorder %s102, %s118
      %p120 = scmp.eq.s32.totalorder %s21, 0
      %p121 = por %p119, %p120
      %s122 = ssub.s32 %s15, %s22
      %p123 = scmp.eq.s32.totalorder %s122, 0
      %s125 = sadd.s32 %s124, 1
      %s126 = scalar_select %p123, %s124, %s125
      %p129 = pneg %p123
      %p130 = scmp.eq.s32.totalorder %s15, 1
      %p131 = por %p129, %p130
      %p132 = scmp.ne.s32.totalorder %s124, %s127
      %p133 = scmp.eq.s32.totalorder %s15, 0
      %p134 = por %p132, %p133
      %p135 = scmp.ne.s32.totalorder %s124, %s127
      %p136 = scmp.eq.s32.totalorder %s20, 1
      %p137 = por %p135, %p136
      %p138 = scmp.ne.s32.totalorder %s127, %s128
      %p139 = scmp.eq.s32.totalorder %s20, 0
      %p140 = por %p138, %p139
      %p141 = scmp.ne.s32.totalorder %s127, %s128
      %p142 = scmp.eq.s32.totalorder %s21, 1
      %p143 = por %p141, %p142
      %p145 = scmp.ne.s32.totalorder %s128, %s144
      %p146 = scmp.eq.s32.totalorder %s21, 0
      %p147 = por %p145, %p146
      %p148 = scmp.le.s32.totalorder 1, %s15
      %p149 = scmp.lt.s32.totalorder %s15, 3
      %p150 = pnand %p148, %p149
      %p151 = pneg %p150
      // Predicated region
      $region9: #{tpu_custom_call.1} parent=5 // pred_check
        _
      $region10: #{tpu_custom_call.1} parent=5 // pred_check_branch
        %153 = sbr.rel (%p150) target = $region12
      $region11: #{tpu_custom_call.1} parent=5 // pred_region
        %s154 = ssub.s32 %s15, 1
        // Predicated region
        $region13: #{tpu_custom_call.1} parent=11 // pred_check
          %p155 = pneg %p62
        $region14: #{tpu_custom_call.1} parent=11 // pred_check_branch
          %157 = sbr.rel (%p155) target = $region16
        $region15: #{tpu_custom_call.1} parent=11 // pred_region
          %s159 = ssub.s32 64, 64
          %160 = vsyncadd [#allocation4], %s159
          %163 = dma.hbm_to_smem %s1, 64, [#allocation5], [#allocation4]
        $region16: #{tpu_custom_call.1} parent=11 // pred_fallthru
          _
      $region12: #{tpu_custom_call.1} parent=5 // pred_fallthru
        _
      %p164 = scmp.lt.s32.totalorder %s15, 2
      // Predicated region
      $region17: #{tpu_custom_call.1} parent=5 // pred_check
        %p165 = pneg %p164
      $region18: #{tpu_custom_call.1} parent=5 // pred_check_branch
        %167 = sbr.rel (%p165) target = $region20
      $region19: #{tpu_custom_call.1} parent=5 // pred_region
        // Predicated region
        $region21: #{tpu_custom_call.1} parent=19 // pred_check
          %p168 = pneg %p35
        $region22: #{tpu_custom_call.1} parent=19 // pred_check_branch
          %170 = sbr.rel (%p168) target = $region24
        $region23: #{tpu_custom_call.1} parent=19 // pred_region
          %s171 = sand.u32 %s25, 1
          %s172 = scalar_lea.sflag [#allocation3], %s171
          %s173 = sand.u32 %s25, 1
          %s174 = smul.addr %s173, 16
          %s175 = scalar_lea.vmem [#allocation2], %s174
          %s177 = ssub.s32 256, 256
          %178 = vsyncadd %s172, %s177
          %s179 = smul.addr %s15, 2
          %s180 = smul.addr %s179, 128
          %s181 = scalar_lea.hbm %s0, %s180
          %s182 = sshll.u32 %s175, 4
          %s183 = int_to_ptr.vmem [resolvable:$true] %s182
          %188 = dma.hbm_to_vmem [thread:$0]  %s181, 256, %s183, %s172, 128, 128, 8
        $region24: #{tpu_custom_call.1} parent=19 // pred_fallthru
          _
      $region20: #{tpu_custom_call.1} parent=5 // pred_fallthru
        _
      %p189 = scmp.le.s32.totalorder 1, %s15
      %p190 = scmp.lt.s32.totalorder %s15, 3
      %p191 = pnand %p189, %p190
      %p192 = pneg %p191
      // Predicated region
      $region25: #{tpu_custom_call.1} parent=5 // pred_check
        _
      $region26: #{tpu_custom_call.1} parent=5 // pred_check_branch
        %194 = sbr.rel (%p191) target = $region28
      $region27: #{tpu_custom_call.1} parent=5 // pred_region
        %s195 = ssub.s32 %s15, 1
        %s196 = sand.u32 %s28, 1
        %s197 = scalar_lea.sflag [#allocation3], %s196
        %s198 = sand.u32 %s28, 1
        %s199 = smul.addr %s198, 16
        %s200 = scalar_lea.vmem [#allocation2], %s199
        // Predicated region
        $region29: #{tpu_custom_call.1} parent=27 // pred_check
          %p201 = pneg %p41
        $region30: #{tpu_custom_call.1} parent=27 // pred_check_branch
          %203 = sbr.rel (%p201) target = $region32
        $region31: #{tpu_custom_call.1} parent=27 // pred_region
          %204 = dma.done %s197, 256
        $region32: #{tpu_custom_call.1} parent=27 // pred_fallthru
          _
        // Predicated region
        $region33: #{tpu_custom_call.1} parent=27 // pred_check
          %p205 = pneg %p62
        $region34: #{tpu_custom_call.1} parent=27 // pred_check_branch
          %207 = sbr.rel (%p205) target = $region36
        $region35: #{tpu_custom_call.1} parent=27 // pred_region
          %208 = dma.done [#allocation4], 64
        $region36: #{tpu_custom_call.1} parent=27 // pred_fallthru
          _
        %209 = sfence
        %s210 = sand.u32 %s28, 1
        %s211 = scalar_lea.sflag [#allocation3], %s210
        %s212 = sand.u32 %s28, 1
        %s213 = smul.addr %s212, 16
        %s214 = scalar_lea.vmem [#allocation2], %s213
        %p215 = pneg %p41
        %p216 = pneg %p38
        %p217 = pneg %p62
        %p218 = pneg %p59
        %p219 = pneg %p88
        %p220 = pneg %p85
        %p221 = scmp.lt.s32.totalorder %s20, 1
        %s222 = scalar_select %p221, %s20, 1
        %s223 = smul.addr %s222, 8
        %s224 = smul.addr %s223, 8
        %s225 = scalar_lea.vmem %s2, %s224
        %p226 = pneg %p114
        %p227 = pneg %p111
        %p228 = scmp.lt.s32.totalorder %s20, 1
        %s229 = scalar_select %p228, %s20, 1
        %s230 = smul.addr %s229, 8
        %s231 = smul.addr %s230, 8
        %s232 = scalar_lea.vmem %s3, %s231
        %p233 = pneg %p140
        %p234 = pneg %p137
        %p235 = scmp.lt.s32.totalorder %s20, 1
        %s236 = scalar_select %p235, %s20, 1
        %s237 = smul.addr %s236, 4
        %s238 = smul.addr %s237, 4
        %s239 = scalar_lea.vmem %s4, %s238
        %p240 = scmp.lt.s32.totalorder %s20, 1
        %s241 = scalar_select %p240, %s20, 1
        %s242 = smul.addr %s241, 8
        %s243 = smul.addr %s242, 8
        %s244 = scalar_lea.vmem %s2, %s243
        %p245 = scmp.lt.s32.totalorder %s20, 1
        %s246 = scalar_select %p245, %s20, 1
        %s247 = smul.addr %s246, 8
        %s248 = smul.addr %s247, 8
        %s249 = scalar_lea.vmem %s3, %s248
        %p250 = scmp.lt.s32.totalorder %s20, 1
        %s251 = scalar_select %p250, %s20, 1
        %s252 = smul.addr %s251, 4
        %s253 = smul.addr %s252, 4
        %s254 = scalar_lea.vmem %s4, %s253
        %v255 = vld [vmem:[%s200] sm:$0xff]
        %v256 = vld [vmem:[%s200 + $0x8] sm:$0xff]
        %s257 = sld [smem:[#allocation5]]
        %v258 = vstv %s257
        %v259 = vmul.f32 %v258, %v255
        %v260 = vmul.f32 %v258, %v256
        %v261 = vadd.f32 %v259, 0.0
        %v262 = vadd.f32 %v260, 0.0
        %s263 = sld [smem:[#allocation5 + $0x80]]
        %v264 = vstv %s263
        %v265 = vmul.f32 %v264, %v255
        %v266 = vmul.f32 %v264, %v256
        %v267 = vadd.f32 %v265, 0.0
        %v268 = vadd.f32 %v266, 0.0
        %s269 = sld [smem:[#allocation5 + $0x100]]
        %v270 = vstv %s269
        %v271 = vmul.f32 %v270, %v255
        %v272 = vmul.f32 %v270, %v256
        %v273 = vadd.f32 %v271, 0.0
        %v274 = vadd.f32 %v272, 0.0
        %s275 = sld [smem:[#allocation5 + $0x180]]
        %v276 = vstv %s275
        %v277 = vmul.f32 %v276, %v255
        %v278 = vmul.f32 %v276, %v256
        %v279 = vadd.f32 %v277, 0.0
        %v280 = vadd.f32 %v278, 0.0
        %s281 = sld [smem:[#allocation5 + $0x1]]
        %v282 = vstv %s281
        %v283 = vmul.f32 %v282, %v255
        %v284 = vmul.f32 %v282, %v256
        %287 = vrot.lane.b32.xlu0 %v283, 127
        %v288 = vpop.permute.xlu0 %287
        %289 = vrot.lane.b32.xlu0 %v284, 127
        %v290 = vpop.permute.xlu0 %289
        %v293 = vadd.f32 %v261, %v288
        %v294 = vadd.f32 %v262, %v290
        %s295 = sld [smem:[#allocation5 + $0x81]]
        %v296 = vstv %s295
        %v297 = vmul.f32 %v296, %v255
        %v298 = vmul.f32 %v296, %v256
        %301 = vrot.lane.b32.xlu0 %v297, 127
        %v302 = vpop.permute.xlu0 %301
        %303 = vrot.lane.b32.xlu0 %v298, 127
        %v304 = vpop.permute.xlu0 %303
        %v307 = vadd.f32 %v267, %v302
        %v308 = vadd.f32 %v268, %v304
        %s309 = sld [smem:[#allocation5 + $0x101]]
        %v310 = vstv %s309
        %v311 = vmul.f32 %v310, %v255
        %v312 = vmul.f32 %v310, %v256
        %315 = vrot.lane.b32.xlu0 %v311, 127
        %v316 = vpop.permute.xlu0 %315
        %317 = vrot.lane.b32.xlu0 %v312, 127
        %v318 = vpop.permute.xlu0 %317
        %v321 = vadd.f32 %v273, %v316
        %v322 = vadd.f32 %v274, %v318
        %s323 = sld [smem:[#allocation5 + $0x181]]
        %v324 = vstv %s323
        %v325 = vmul.f32 %v324, %v255
        %v326 = vmul.f32 %v324, %v256
        %329 = vrot.lane.b32.xlu0 %v325, 127
        %v330 = vpop.permute.xlu0 %329
        %331 = vrot.lane.b32.xlu0 %v326, 127
        %v332 = vpop.permute.xlu0 %331
        %v335 = vadd.f32 %v279, %v330
        %v336 = vadd.f32 %v280, %v332
        %s337 = sld [smem:[#allocation5 + $0x2]]
        %v338 = vstv %s337
        %v339 = vmul.f32 %v338, %v255
        %v340 = vmul.f32 %v338, %v256
        %343 = vrot.lane.b32.xlu0 %v339, 126
        %v344 = vpop.permute.xlu0 %343
        %345 = vrot.lane.b32.xlu0 %v340, 126
        %v346 = vpop.permute.xlu0 %345
        %v349 = vadd.f32 %v293, %v344
        %v350 = vadd.f32 %v294, %v346
        %s351 = sld [smem:[#allocation5 + $0x82]]
        %v352 = vstv %s351
        %v353 = vmul.f32 %v352, %v255
        %v354 = vmul.f32 %v352, %v256
        %357 = vrot.lane.b32.xlu0 %v353, 126
        %v358 = vpop.permute.xlu0 %357
        %359 = vrot.lane.b32.xlu0 %v354, 126
        %v360 = vpop.permute.xlu0 %359
        %v363 = vadd.f32 %v307, %v358
        %v364 = vadd.f32 %v308, %v360
        %s365 = sld [smem:[#allocation5 + $0x102]]
        %v366 = vstv %s365
        %v367 = vmul.f32 %v366, %v255
        %v368 = vmul.f32 %v366, %v256
        %371 = vrot.lane.b32.xlu0 %v367, 126
        %v372 = vpop.permute.xlu0 %371
        %373 = vrot.lane.b32.xlu0 %v368, 126
        %v374 = vpop.permute.xlu0 %373
        %v377 = vadd.f32 %v321, %v372
        %v378 = vadd.f32 %v322, %v374
        %s379 = sld [smem:[#allocation5 + $0x182]]
        %v380 = vstv %s379
        %v381 = vmul.f32 %v380, %v255
        %v382 = vmul.f32 %v380, %v256
        %385 = vrot.lane.b32.xlu0 %v381, 126
        %v386 = vpop.permute.xlu0 %385
        %387 = vrot.lane.b32.xlu0 %v382, 126
        %v388 = vpop.permute.xlu0 %387
        %v391 = vadd.f32 %v335, %v386
        %v392 = vadd.f32 %v336, %v388
        %s393 = sld [smem:[#allocation5 + $0x3]]
        %v394 = vstv %s393
        %v395 = vmul.f32 %v394, %v255
        %v396 = vmul.f32 %v394, %v256
        %399 = vrot.lane.b32.xlu0 %v395, 125
        %v400 = vpop.permute.xlu0 %399
        %401 = vrot.lane.b32.xlu0 %v396, 125
        %v402 = vpop.permute.xlu0 %401
        %v405 = vadd.f32 %v349, %v400
        %v406 = vadd.f32 %v350, %v402
        %s407 = sld [smem:[#allocation5 + $0x83]]
        %v408 = vstv %s407
        %v409 = vmul.f32 %v408, %v255
        %v410 = vmul.f32 %v408, %v256
        %413 = vrot.lane.b32.xlu0 %v409, 125
        %v414 = vpop.permute.xlu0 %413
        %415 = vrot.lane.b32.xlu0 %v410, 125
        %v416 = vpop.permute.xlu0 %415
        %v419 = vadd.f32 %v363, %v414
        %v420 = vadd.f32 %v364, %v416
        %s421 = sld [smem:[#allocation5 + $0x103]]
        %v422 = vstv %s421
        %v423 = vmul.f32 %v422, %v255
        %v424 = vmul.f32 %v422, %v256
        %427 = vrot.lane.b32.xlu0 %v423, 125
        %v428 = vpop.permute.xlu0 %427
        %429 = vrot.lane.b32.xlu0 %v424, 125
        %v430 = vpop.permute.xlu0 %429
        %v433 = vadd.f32 %v377, %v428
        %v434 = vadd.f32 %v378, %v430
        %s435 = sld [smem:[#allocation5 + $0x183]]
        %v436 = vstv %s435
        %v437 = vmul.f32 %v436, %v255
        %v438 = vmul.f32 %v436, %v256
        %441 = vrot.lane.b32.xlu0 %v437, 125
        %v442 = vpop.permute.xlu0 %441
        %443 = vrot.lane.b32.xlu0 %v438, 125
        %v444 = vpop.permute.xlu0 %443
        %v447 = vadd.f32 %v391, %v442
        %v448 = vadd.f32 %v392, %v444
        %s449 = sld [smem:[#allocation5 + $0x4]]
        %v450 = vstv %s449
        %v451 = vmul.f32 %v450, %v255
        %v452 = vmul.f32 %v450, %v256
        %vm455 = vcmask 1046528
        %v456 = vrot.slane %v451, 1
        %v457 = vrot.slane %v452, 1
        %v458 = vsel %vm455, %v456, %v457
        %v461 = vadd.f32 %v405, %v458
        %v462 = vadd.f32 %v406, %v457
        %s463 = sld [smem:[#allocation5 + $0x84]]
        %v464 = vstv %s463
        %v465 = vmul.f32 %v464, %v255
        %v466 = vmul.f32 %v464, %v256
        %v469 = vrot.slane %v465, 1
        %v470 = vrot.slane %v466, 1
        %v471 = vsel %vm455, %v469, %v470
        %v474 = vadd.f32 %v419, %v471
        %v475 = vadd.f32 %v420, %v470
        %s476 = sld [smem:[#allocation5 + $0x104]]
        %v477 = vstv %s476
        %v478 = vmul.f32 %v477, %v255
        %v479 = vmul.f32 %v477, %v256
        %v482 = vrot.slane %v478, 1
        %v483 = vrot.slane %v479, 1
        %v484 = vsel %vm455, %v482, %v483
        %v487 = vadd.f32 %v433, %v484
        %v488 = vadd.f32 %v434, %v483
        %s489 = sld [smem:[#allocation5 + $0x184]]
        %v490 = vstv %s489
        %v491 = vmul.f32 %v490, %v255
        %v492 = vmul.f32 %v490, %v256
        %v495 = vrot.slane %v491, 1
        %v496 = vrot.slane %v492, 1
        %v497 = vsel %vm455, %v495, %v496
        %v500 = vadd.f32 %v447, %v497
        %v501 = vadd.f32 %v448, %v496
        %s502 = sld [smem:[#allocation5 + $0x5]]
        %v503 = vstv %s502
        %v504 = vmul.f32 %v503, %v255
        %v505 = vmul.f32 %v503, %v256
        %v508 = vrot.slane %v504, 1
        %v509 = vrot.slane %v505, 1
        %v510 = vsel %vm455, %v508, %v509
        %511 = vrot.lane.b32.xlu0 %v510, 127
        %v512 = vpop.permute.xlu0 %511
        %513 = vrot.lane.b32.xlu0 %v509, 127
        %v514 = vpop.permute.xlu0 %513
        %v517 = vadd.f32 %v461, %v512
        %v518 = vadd.f32 %v462, %v514
        %s519 = sld [smem:[#allocation5 + $0x85]]
        %v520 = vstv %s519
        %v521 = vmul.f32 %v520, %v255
        %v522 = vmul.f32 %v520, %v256
        %v525 = vrot.slane %v521, 1
        %v526 = vrot.slane %v522, 1
        %v527 = vsel %vm455, %v525, %v526
        %528 = vrot.lane.b32.xlu0 %v527, 127
        %v529 = vpop.permute.xlu0 %528
        %530 = vrot.lane.b32.xlu0 %v526, 127
        %v531 = vpop.permute.xlu0 %530
        %v534 = vadd.f32 %v474, %v529
        %v535 = vadd.f32 %v475, %v531
        %s536 = sld [smem:[#allocation5 + $0x105]]
        %v537 = vstv %s536
        %v538 = vmul.f32 %v537, %v255
        %v539 = vmul.f32 %v537, %v256
        %v542 = vrot.slane %v538, 1
        %v543 = vrot.slane %v539, 1
        %v544 = vsel %vm455, %v542, %v543
        %545 = vrot.lane.b32.xlu0 %v544, 127
        %v546 = vpop.permute.xlu0 %545
        %547 = vrot.lane.b32.xlu0 %v543, 127
        %v548 = vpop.permute.xlu0 %547
        %v551 = vadd.f32 %v487, %v546
        %v552 = vadd.f32 %v488, %v548
        %s553 = sld [smem:[#allocation5 + $0x185]]
        %v554 = vstv %s553
        %v555 = vmul.f32 %v554, %v255
        %v556 = vmul.f32 %v554, %v256
        %v559 = vrot.slane %v555, 1
        %v560 = vrot.slane %v556, 1
        %v561 = vsel %vm455, %v559, %v560
        %562 = vrot.lane.b32.xlu0 %v561, 127
        %v563 = vpop.permute.xlu0 %562
        %564 = vrot.lane.b32.xlu0 %v560, 127
        %v565 = vpop.permute.xlu0 %564
        %v568 = vadd.f32 %v500, %v563
        %v569 = vadd.f32 %v501, %v565
        %s570 = sld [smem:[#allocation5 + $0x6]]
        %v571 = vstv %s570
        %v572 = vmul.f32 %v571, %v255
        %v573 = vmul.f32 %v571, %v256
        %v576 = vrot.slane %v572, 1
        %v577 = vrot.slane %v573, 1
        %v578 = vsel %vm455, %v576, %v577
        %579 = vrot.lane.b32.xlu0 %v578, 126
        %v580 = vpop.permute.xlu0 %579
        %581 = vrot.lane.b32.xlu0 %v577, 126
        %v582 = vpop.permute.xlu0 %581
        %v585 = vadd.f32 %v517, %v580
        %v586 = vadd.f32 %v518, %v582
        %s587 = sld [smem:[#allocation5 + $0x86]]
        %v588 = vstv %s587
        %v589 = vmul.f32 %v588, %v255
        %v590 = vmul.f32 %v588, %v256
        %v593 = vrot.slane %v589, 1
        %v594 = vrot.slane %v590, 1
        %v595 = vsel %vm455, %v593, %v594
        %596 = vrot.lane.b32.xlu0 %v595, 126
        %v597 = vpop.permute.xlu0 %596
        %598 = vrot.lane.b32.xlu0 %v594, 126
        %v599 = vpop.permute.xlu0 %598
        %v602 = vadd.f32 %v534, %v597
        %v603 = vadd.f32 %v535, %v599
        %s604 = sld [smem:[#allocation5 + $0x106]]
        %v605 = vstv %s604
        %v606 = vmul.f32 %v605, %v255
        %v607 = vmul.f32 %v605, %v256
        %v610 = vrot.slane %v606, 1
        %v611 = vrot.slane %v607, 1
        %v612 = vsel %vm455, %v610, %v611
        %613 = vrot.lane.b32.xlu0 %v612, 126
        %v614 = vpop.permute.xlu0 %613
        %615 = vrot.lane.b32.xlu0 %v611, 126
        %v616 = vpop.permute.xlu0 %615
        %v619 = vadd.f32 %v551, %v614
        %v620 = vadd.f32 %v552, %v616
        %s621 = sld [smem:[#allocation5 + $0x186]]
        %v622 = vstv %s621
        %v623 = vmul.f32 %v622, %v255
        %v624 = vmul.f32 %v622, %v256
        %v627 = vrot.slane %v623, 1
        %v628 = vrot.slane %v624, 1
        %v629 = vsel %vm455, %v627, %v628
        %630 = vrot.lane.b32.xlu0 %v629, 126
        %v631 = vpop.permute.xlu0 %630
        %632 = vrot.lane.b32.xlu0 %v628, 126
        %v633 = vpop.permute.xlu0 %632
        %v636 = vadd.f32 %v568, %v631
        %v637 = vadd.f32 %v569, %v633
        %s638 = sld [smem:[#allocation5 + $0x7]]
        %v639 = vstv %s638
        %v640 = vmul.f32 %v639, %v255
        %v641 = vmul.f32 %v639, %v256
        %v644 = vrot.slane %v640, 1
        %v645 = vrot.slane %v641, 1
        %v646 = vsel %vm455, %v644, %v645
        %647 = vrot.lane.b32.xlu0 %v646, 125
        %v648 = vpop.permute.xlu0 %647
        %649 = vrot.lane.b32.xlu0 %v645, 125
        %v650 = vpop.permute.xlu0 %649
        %v653 = vadd.f32 %v585, %v648
        %v654 = vadd.f32 %v586, %v650
        %s655 = sld [smem:[#allocation5 + $0x87]]
        %v656 = vstv %s655
        %v657 = vmul.f32 %v656, %v255
        %v658 = vmul.f32 %v656, %v256
        %v661 = vrot.slane %v657, 1
        %v662 = vrot.slane %v658, 1
        %v663 = vsel %vm455, %v661, %v662
        %664 = vrot.lane.b32.xlu0 %v663, 125
        %v665 = vpop.permute.xlu0 %664
        %666 = vrot.lane.b32.xlu0 %v662, 125
        %v667 = vpop.permute.xlu0 %666
        %v670 = vadd.f32 %v602, %v665
        %v671 = vadd.f32 %v603, %v667
        %s672 = sld [smem:[#allocation5 + $0x107]]
        %v673 = vstv %s672
        %v674 = vmul.f32 %v673, %v255
        %v675 = vmul.f32 %v673, %v256
        %v678 = vrot.slane %v674, 1
        %v679 = vrot.slane %v675, 1
        %v680 = vsel %vm455, %v678, %v679
        %681 = vrot.lane.b32.xlu0 %v680, 125
        %v682 = vpop.permute.xlu0 %681
        %683 = vrot.lane.b32.xlu0 %v679, 125
        %v684 = vpop.permute.xlu0 %683
        %v687 = vadd.f32 %v619, %v682
        %v688 = vadd.f32 %v620, %v684
        %s689 = sld [smem:[#allocation5 + $0x187]]
        %v690 = vstv %s689
        %v691 = vmul.f32 %v690, %v255
        %v692 = vmul.f32 %v690, %v256
        %v695 = vrot.slane %v691, 1
        %v696 = vrot.slane %v692, 1
        %v697 = vsel %vm455, %v695, %v696
        %698 = vrot.lane.b32.xlu0 %v697, 125
        %v699 = vpop.permute.xlu0 %698
        %700 = vrot.lane.b32.xlu0 %v696, 125
        %v701 = vpop.permute.xlu0 %700
        %v704 = vadd.f32 %v636, %v699
        %v705 = vadd.f32 %v637, %v701
        %s706 = sld [smem:[#allocation5 + $0x8]]
        %v707 = vstv %s706
        %v708 = vmul.f32 %v707, %v255
        %v709 = vmul.f32 %v707, %v256
        %vm712 = vcmask 1045504
        %v713 = vrot.slane %v708, 2
        %v714 = vrot.slane %v709, 2
        %v715 = vsel %vm712, %v713, %v714
        %v718 = vadd.f32 %v653, %v715
        %v719 = vadd.f32 %v654, %v714
        %s720 = sld [smem:[#allocation5 + $0x88]]
        %v721 = vstv %s720
        %v722 = vmul.f32 %v721, %v255
        %v723 = vmul.f32 %v721, %v256
        %v726 = vrot.slane %v722, 2
        %v727 = vrot.slane %v723, 2
        %v728 = vsel %vm712, %v726, %v727
        %v731 = vadd.f32 %v670, %v728
        %v732 = vadd.f32 %v671, %v727
        %s733 = sld [smem:[#allocation5 + $0x108]]
        %v734 = vstv %s733
        %v735 = vmul.f32 %v734, %v255
        %v736 = vmul.f32 %v734, %v256
        %v739 = vrot.slane %v735, 2
        %v740 = vrot.slane %v736, 2
        %v741 = vsel %vm712, %v739, %v740
        %v744 = vadd.f32 %v687, %v741
        %v745 = vadd.f32 %v688, %v740
        %s746 = sld [smem:[#allocation5 + $0x188]]
        %v747 = vstv %s746
        %v748 = vmul.f32 %v747, %v255
        %v749 = vmul.f32 %v747, %v256
        %v752 = vrot.slane %v748, 2
        %v753 = vrot.slane %v749, 2
        %v754 = vsel %vm712, %v752, %v753
        %v757 = vadd.f32 %v704, %v754
        %v758 = vadd.f32 %v705, %v753
        %s759 = sld [smem:[#allocation5 + $0x9]]
        %v760 = vstv %s759
        %v761 = vmul.f32 %v760, %v255
        %v762 = vmul.f32 %v760, %v256
        %v765 = vrot.slane %v761, 2
        %v766 = vrot.slane %v762, 2
        %v767 = vsel %vm712, %v765, %v766
        %768 = vrot.lane.b32.xlu0 %v767, 127
        %v769 = vpop.permute.xlu0 %768
        %770 = vrot.lane.b32.xlu0 %v766, 127
        %v771 = vpop.permute.xlu0 %770
        %v774 = vadd.f32 %v718, %v769
        %v775 = vadd.f32 %v719, %v771
        %s776 = sld [smem:[#allocation5 + $0x89]]
        %v777 = vstv %s776
        %v778 = vmul.f32 %v777, %v255
        %v779 = vmul.f32 %v777, %v256
        %v782 = vrot.slane %v778, 2
        %v783 = vrot.slane %v779, 2
        %v784 = vsel %vm712, %v782, %v783
        %785 = vrot.lane.b32.xlu0 %v784, 127
        %v786 = vpop.permute.xlu0 %785
        %787 = vrot.lane.b32.xlu0 %v783, 127
        %v788 = vpop.permute.xlu0 %787
        %v791 = vadd.f32 %v731, %v786
        %v792 = vadd.f32 %v732, %v788
        %s793 = sld [smem:[#allocation5 + $0x109]]
        %v794 = vstv %s793
        %v795 = vmul.f32 %v794, %v255
        %v796 = vmul.f32 %v794, %v256
        %v799 = vrot.slane %v795, 2
        %v800 = vrot.slane %v796, 2
        %v801 = vsel %vm712, %v799, %v800
        %802 = vrot.lane.b32.xlu0 %v801, 127
        %v803 = vpop.permute.xlu0 %802
        %804 = vrot.lane.b32.xlu0 %v800, 127
        %v805 = vpop.permute.xlu0 %804
        %v808 = vadd.f32 %v744, %v803
        %v809 = vadd.f32 %v745, %v805
        %s810 = sld [smem:[#allocation5 + $0x189]]
        %v811 = vstv %s810
        %v812 = vmul.f32 %v811, %v255
        %v813 = vmul.f32 %v811, %v256
        %v816 = vrot.slane %v812, 2
        %v817 = vrot.slane %v813, 2
        %v818 = vsel %vm712, %v816, %v817
        %819 = vrot.lane.b32.xlu0 %v818, 127
        %v820 = vpop.permute.xlu0 %819
        %821 = vrot.lane.b32.xlu0 %v817, 127
        %v822 = vpop.permute.xlu0 %821
        %v825 = vadd.f32 %v757, %v820
        %v826 = vadd.f32 %v758, %v822
        %s827 = sld [smem:[#allocation5 + $0xa]]
        %v828 = vstv %s827
        %v829 = vmul.f32 %v828, %v255
        %v830 = vmul.f32 %v828, %v256
        %v833 = vrot.slane %v829, 2
        %v834 = vrot.slane %v830, 2
        %v835 = vsel %vm712, %v833, %v834
        %836 = vrot.lane.b32.xlu0 %v835, 126
        %v837 = vpop.permute.xlu0 %836
        %838 = vrot.lane.b32.xlu0 %v834, 126
        %v839 = vpop.permute.xlu0 %838
        %v842 = vadd.f32 %v774, %v837
        %v843 = vadd.f32 %v775, %v839
        %s844 = sld [smem:[#allocation5 + $0x8a]]
        %v845 = vstv %s844
        %v846 = vmul.f32 %v845, %v255
        %v847 = vmul.f32 %v845, %v256
        %v850 = vrot.slane %v846, 2
        %v851 = vrot.slane %v847, 2
        %v852 = vsel %vm712, %v850, %v851
        %853 = vrot.lane.b32.xlu0 %v852, 126
        %v854 = vpop.permute.xlu0 %853
        %855 = vrot.lane.b32.xlu0 %v851, 126
        %v856 = vpop.permute.xlu0 %855
        %v859 = vadd.f32 %v791, %v854
        %v860 = vadd.f32 %v792, %v856
        %s861 = sld [smem:[#allocation5 + $0x10a]]
        %v862 = vstv %s861
        %v863 = vmul.f32 %v862, %v255
        %v864 = vmul.f32 %v862, %v256
        %v867 = vrot.slane %v863, 2
        %v868 = vrot.slane %v864, 2
        %v869 = vsel %vm712, %v867, %v868
        %870 = vrot.lane.b32.xlu0 %v869, 126
        %v871 = vpop.permute.xlu0 %870
        %872 = vrot.lane.b32.xlu0 %v868, 126
        %v873 = vpop.permute.xlu0 %872
        %v876 = vadd.f32 %v808, %v871
        %v877 = vadd.f32 %v809, %v873
        %s878 = sld [smem:[#allocation5 + $0x18a]]
        %v879 = vstv %s878
        %v880 = vmul.f32 %v879, %v255
        %v881 = vmul.f32 %v879, %v256
        %v884 = vrot.slane %v880, 2
        %v885 = vrot.slane %v881, 2
        %v886 = vsel %vm712, %v884, %v885
        %887 = vrot.lane.b32.xlu0 %v886, 126
        %v888 = vpop.permute.xlu0 %887
        %889 = vrot.lane.b32.xlu0 %v885, 126
        %v890 = vpop.permute.xlu0 %889
        %v893 = vadd.f32 %v825, %v888
        %v894 = vadd.f32 %v826, %v890
        %s895 = sld [smem:[#allocation5 + $0xb]]
        %v896 = vstv %s895
        %v897 = vmul.f32 %v896, %v255
        %v898 = vmul.f32 %v896, %v256
        %v901 = vrot.slane %v897, 2
        %v902 = vrot.slane %v898, 2
        %v903 = vsel %vm712, %v901, %v902
        %904 = vrot.lane.b32.xlu0 %v903, 125
        %v905 = vpop.permute.xlu0 %904
        %906 = vrot.lane.b32.xlu0 %v902, 125
        %v907 = vpop.permute.xlu0 %906
        %v910 = vadd.f32 %v842, %v905
        %v911 = vadd.f32 %v843, %v907
        %s912 = sld [smem:[#allocation5 + $0x8b]]
        %v913 = vstv %s912
        %v914 = vmul.f32 %v913, %v255
        %v915 = vmul.f32 %v913, %v256
        %v918 = vrot.slane %v914, 2
        %v919 = vrot.slane %v915, 2
        %v920 = vsel %vm712, %v918, %v919
        %921 = vrot.lane.b32.xlu0 %v920, 125
        %v922 = vpop.permute.xlu0 %921
        %923 = vrot.lane.b32.xlu0 %v919, 125
        %v924 = vpop.permute.xlu0 %923
        %v927 = vadd.f32 %v859, %v922
        %v928 = vadd.f32 %v860, %v924
        %s929 = sld [smem:[#allocation5 + $0x10b]]
        %v930 = vstv %s929
        %v931 = vmul.f32 %v930, %v255
        %v932 = vmul.f32 %v930, %v256
        %v935 = vrot.slane %v931, 2
        %v936 = vrot.slane %v932, 2
        %v937 = vsel %vm712, %v935, %v936
        %938 = vrot.lane.b32.xlu0 %v937, 125
        %v939 = vpop.permute.xlu0 %938
        %940 = vrot.lane.b32.xlu0 %v936, 125
        %v941 = vpop.permute.xlu0 %940
        %v944 = vadd.f32 %v876, %v939
        %v945 = vadd.f32 %v877, %v941
        %s946 = sld [smem:[#allocation5 + $0x18b]]
        %v947 = vstv %s946
        %v948 = vmul.f32 %v947, %v255
        %v949 = vmul.f32 %v947, %v256
        %v952 = vrot.slane %v948, 2
        %v953 = vrot.slane %v949, 2
        %v954 = vsel %vm712, %v952, %v953
        %955 = vrot.lane.b32.xlu0 %v954, 125
        %v956 = vpop.permute.xlu0 %955
        %957 = vrot.lane.b32.xlu0 %v953, 125
        %v958 = vpop.permute.xlu0 %957
        %v961 = vadd.f32 %v893, %v956
        %v962 = vadd.f32 %v894, %v958
        %s963 = sld [smem:[#allocation5 + $0xc]]
        %v964 = vstv %s963
        %v965 = vmul.f32 %v964, %v255
        %v966 = vmul.f32 %v964, %v256
        %vm969 = vcmask 1044480
        %v970 = vrot.slane %v965, 3
        %v971 = vrot.slane %v966, 3
        %v972 = vsel %vm969, %v970, %v971
        %v975 = vadd.f32 %v910, %v972
        %v976 = vadd.f32 %v911, %v971
        %s977 = sld [smem:[#allocation5 + $0x8c]]
        %v978 = vstv %s977
        %v979 = vmul.f32 %v978, %v255
        %v980 = vmul.f32 %v978, %v256
        %v983 = vrot.slane %v979, 3
        %v984 = vrot.slane %v980, 3
        %v985 = vsel %vm969, %v983, %v984
        %v988 = vadd.f32 %v927, %v985
        %v989 = vadd.f32 %v928, %v984
        %s990 = sld [smem:[#allocation5 + $0x10c]]
        %v991 = vstv %s990
        %v992 = vmul.f32 %v991, %v255
        %v993 = vmul.f32 %v991, %v256
        %v996 = vrot.slane %v992, 3
        %v997 = vrot.slane %v993, 3
        %v998 = vsel %vm969, %v996, %v997
        %v1001 = vadd.f32 %v944, %v998
        %v1002 = vadd.f32 %v945, %v997
        %s1003 = sld [smem:[#allocation5 + $0x18c]]
        %v1004 = vstv %s1003
        %v1005 = vmul.f32 %v1004, %v255
        %v1006 = vmul.f32 %v1004, %v256
        %v1009 = vrot.slane %v1005, 3
        %v1010 = vrot.slane %v1006, 3
        %v1011 = vsel %vm969, %v1009, %v1010
        %v1014 = vadd.f32 %v961, %v1011
        %v1015 = vadd.f32 %v962, %v1010
        %s1016 = sld [smem:[#allocation5 + $0xd]]
        %v1017 = vstv %s1016
        %v1018 = vmul.f32 %v1017, %v255
        %v1019 = vmul.f32 %v1017, %v256
        %v1022 = vrot.slane %v1018, 3
        %v1023 = vrot.slane %v1019, 3
        %v1024 = vsel %vm969, %v1022, %v1023
        %1025 = vrot.lane.b32.xlu0 %v1024, 127
        %v1026 = vpop.permute.xlu0 %1025
        %1027 = vrot.lane.b32.xlu0 %v1023, 127
        %v1028 = vpop.permute.xlu0 %1027
        %v1031 = vadd.f32 %v975, %v1026
        %v1032 = vadd.f32 %v976, %v1028
        %s1033 = sld [smem:[#allocation5 + $0x8d]]
        %v1034 = vstv %s1033
        %v1035 = vmul.f32 %v1034, %v255
        %v1036 = vmul.f32 %v1034, %v256
        %v1039 = vrot.slane %v1035, 3
        %v1040 = vrot.slane %v1036, 3
        %v1041 = vsel %vm969, %v1039, %v1040
        %1042 = vrot.lane.b32.xlu0 %v1041, 127
        %v1043 = vpop.permute.xlu0 %1042
        %1044 = vrot.lane.b32.xlu0 %v1040, 127
        %v1045 = vpop.permute.xlu0 %1044
        %v1048 = vadd.f32 %v988, %v1043
        %v1049 = vadd.f32 %v989, %v1045
        %s1050 = sld [smem:[#allocation5 + $0x10d]]
        %v1051 = vstv %s1050
        %v1052 = vmul.f32 %v1051, %v255
        %v1053 = vmul.f32 %v1051, %v256
        %v1056 = vrot.slane %v1052, 3
        %v1057 = vrot.slane %v1053, 3
        %v1058 = vsel %vm969, %v1056, %v1057
        %1059 = vrot.lane.b32.xlu0 %v1058, 127
        %v1060 = vpop.permute.xlu0 %1059
        %1061 = vrot.lane.b32.xlu0 %v1057, 127
        %v1062 = vpop.permute.xlu0 %1061
        %v1065 = vadd.f32 %v1001, %v1060
        %v1066 = vadd.f32 %v1002, %v1062
        %s1067 = sld [smem:[#allocation5 + $0x18d]]
        %v1068 = vstv %s1067
        %v1069 = vmul.f32 %v1068, %v255
        %v1070 = vmul.f32 %v1068, %v256
        %v1073 = vrot.slane %v1069, 3
        %v1074 = vrot.slane %v1070, 3
        %v1075 = vsel %vm969, %v1073, %v1074
        %1076 = vrot.lane.b32.xlu0 %v1075, 127
        %v1077 = vpop.permute.xlu0 %1076
        %1078 = vrot.lane.b32.xlu0 %v1074, 127
        %v1079 = vpop.permute.xlu0 %1078
        %v1082 = vadd.f32 %v1014, %v1077
        %v1083 = vadd.f32 %v1015, %v1079
        %s1084 = sld [smem:[#allocation5 + $0xe]]
        %v1085 = vstv %s1084
        %v1086 = vmul.f32 %v1085, %v255
        %v1087 = vmul.f32 %v1085, %v256
        %v1090 = vrot.slane %v1086, 3
        %v1091 = vrot.slane %v1087, 3
        %v1092 = vsel %vm969, %v1090, %v1091
        %1093 = vrot.lane.b32.xlu0 %v1092, 126
        %v1094 = vpop.permute.xlu0 %1093
        %1095 = vrot.lane.b32.xlu0 %v1091, 126
        %v1096 = vpop.permute.xlu0 %1095
        %v1099 = vadd.f32 %v1031, %v1094
        %v1100 = vadd.f32 %v1032, %v1096
        %s1101 = sld [smem:[#allocation5 + $0x8e]]
        %v1102 = vstv %s1101
        %v1103 = vmul.f32 %v1102, %v255
        %v1104 = vmul.f32 %v1102, %v256
        %v1107 = vrot.slane %v1103, 3
        %v1108 = vrot.slane %v1104, 3
        %v1109 = vsel %vm969, %v1107, %v1108
        %1110 = vrot.lane.b32.xlu0 %v1109, 126
        %v1111 = vpop.permute.xlu0 %1110
        %1112 = vrot.lane.b32.xlu0 %v1108, 126
        %v1113 = vpop.permute.xlu0 %1112
        %v1116 = vadd.f32 %v1048, %v1111
        %v1117 = vadd.f32 %v1049, %v1113
        %s1118 = sld [smem:[#allocation5 + $0x10e]]
        %v1119 = vstv %s1118
        %v1120 = vmul.f32 %v1119, %v255
        %v1121 = vmul.f32 %v1119, %v256
        %v1124 = vrot.slane %v1120, 3
        %v1125 = vrot.slane %v1121, 3
        %v1126 = vsel %vm969, %v1124, %v1125
        %1127 = vrot.lane.b32.xlu0 %v1126, 126
        %v1128 = vpop.permute.xlu0 %1127
        %1129 = vrot.lane.b32.xlu0 %v1125, 126
        %v1130 = vpop.permute.xlu0 %1129
        %v1133 = vadd.f32 %v1065, %v1128
        %v1134 = vadd.f32 %v1066, %v1130
        %s1135 = sld [smem:[#allocation5 + $0x18e]]
        %v1136 = vstv %s1135
        %v1137 = vmul.f32 %v1136, %v255
        %v1138 = vmul.f32 %v1136, %v256
        %v1141 = vrot.slane %v1137, 3
        %v1142 = vrot.slane %v1138, 3
        %v1143 = vsel %vm969, %v1141, %v1142
        %1144 = vrot.lane.b32.xlu0 %v1143, 126
        %v1145 = vpop.permute.xlu0 %1144
        %1146 = vrot.lane.b32.xlu0 %v1142, 126
        %v1147 = vpop.permute.xlu0 %1146
        %v1150 = vadd.f32 %v1082, %v1145
        %v1151 = vadd.f32 %v1083, %v1147
        %s1152 = sld [smem:[#allocation5 + $0xf]]
        %v1153 = vstv %s1152
        %v1154 = vmul.f32 %v1153, %v255
        %v1155 = vmul.f32 %v1153, %v256
        %v1158 = vrot.slane %v1154, 3
        %v1159 = vrot.slane %v1155, 3
        %v1160 = vsel %vm969, %v1158, %v1159
        %1161 = vrot.lane.b32.xlu0 %v1160, 125
        %v1162 = vpop.permute.xlu0 %1161
        %1163 = vrot.lane.b32.xlu0 %v1159, 125
        %v1164 = vpop.permute.xlu0 %1163
        %v1167 = vadd.f32 %v1099, %v1162
        %v1168 = vadd.f32 %v1100, %v1164
        %s1169 = sld [smem:[#allocation5 + $0x8f]]
        %v1170 = vstv %s1169
        %v1171 = vmul.f32 %v1170, %v255
        %v1172 = vmul.f32 %v1170, %v256
        %v1175 = vrot.slane %v1171, 3
        %v1176 = vrot.slane %v1172, 3
        %v1177 = vsel %vm969, %v1175, %v1176
        %1178 = vrot.lane.b32.xlu0 %v1177, 125
        %v1179 = vpop.permute.xlu0 %1178
        %1180 = vrot.lane.b32.xlu0 %v1176, 125
        %v1181 = vpop.permute.xlu0 %1180
        %v1184 = vadd.f32 %v1116, %v1179
        %v1185 = vadd.f32 %v1117, %v1181
        %s1186 = sld [smem:[#allocation5 + $0x10f]]
        %v1187 = vstv %s1186
        %v1188 = vmul.f32 %v1187, %v255
        %v1189 = vmul.f32 %v1187, %v256
        %v1192 = vrot.slane %v1188, 3
        %v1193 = vrot.slane %v1189, 3
        %v1194 = vsel %vm969, %v1192, %v1193
        %1195 = vrot.lane.b32.xlu0 %v1194, 125
        %v1196 = vpop.permute.xlu0 %1195
        %1197 = vrot.lane.b32.xlu0 %v1193, 125
        %v1198 = vpop.permute.xlu0 %1197
        %v1201 = vadd.f32 %v1133, %v1196
        %v1202 = vadd.f32 %v1134, %v1198
        %s1203 = sld [smem:[#allocation5 + $0x18f]]
        %v1204 = vstv %s1203
        %v1205 = vmul.f32 %v1204, %v255
        %v1206 = vmul.f32 %v1204, %v256
        %v1209 = vrot.slane %v1205, 3
        %v1210 = vrot.slane %v1206, 3
        %v1211 = vsel %vm969, %v1209, %v1210
        %1212 = vrot.lane.b32.xlu0 %v1211, 125
        %v1213 = vpop.permute.xlu0 %1212
        %1214 = vrot.lane.b32.xlu0 %v1210, 125
        %v1215 = vpop.permute.xlu0 %1214
        %v1218 = vadd.f32 %v1150, %v1213
        %v1219 = vadd.f32 %v1151, %v1215
        %vm1220 = vcmask 105472
        %1221 = vst.msk [vmem:[%s244] sm:$0xff] %vm1220, %v1167
        %vm1222 = vcmask 102400
        %1223 = vst.msk [vmem:[%s244 + $0x8] sm:$0x1f] %vm1222, %v1168
        %v1224 = vmax.f32 %v1167, 0.0
        %v1225 = vmax.f32 %v1168, 0.0
        %1226 = vst.msk [vmem:[%s249] sm:$0xff] %vm1220, %v1224
        %1227 = vst.msk [vmem:[%s249 + $0x8] sm:$0x1f] %vm1222, %v1225
        %vm1228 = vcmask 101376
        %v1229 = vsel %vm1228, %v1224, -inf
        %v1230 = vrot.slane %v1229, 4
        %v1231 = vmax.f32 %v1229, %v1230
        %v1232 = vrot.slane %v1231, 2
        %v1233 = vmax.f32 %v1231, %v1232
        %v1234 = vrot.slane %v1233, 1
        %v1235 = vmax.f32 %v1233, %v1234
        %vm1236 = vcmask 105476
        %v1237 = vsel %vm1236, %v1224, -inf
        %v1238 = vrot.slane %v1237, 4
        %v1239 = vmax.f32 %v1237, %v1238
        %v1240 = vrot.slane %v1239, 2
        %v1241 = vmax.f32 %v1239, %v1240
        %v1242 = vrot.slane %v1241, 1
        %v1243 = vmax.f32 %v1241, %v1242
        %v1244 = vsel %vm1228, %v1225, -inf
        %v1245 = vrot.slane %v1244, 4
        %v1246 = vmax.f32 %v1244, %v1245
        %v1247 = vrot.slane %v1246, 2
        %v1248 = vmax.f32 %v1246, %v1247
        %v1249 = vrot.slane %v1248, 1
        %v1250 = vmax.f32 %v1248, %v1249
        %vm1251 = vcmask 1040384
        %v1252 = vsel %vm1251, %v1235, %v1243
        %vm1253 = vcmask 1041408
        %v1254 = vsel %vm1253, %v1252, %v1250
        %vm1255 = vcmask 26624
        %v1256 = vsel %vm1255, %v1254, -inf
        %1257 = vmax.xlane.f32.xlu0 %v1256
        %v1258 = vpop.xlane.xlu0 %1257
        %vm1259 = vcmask 59424
        %v1260 = vsel %vm1259, %v1254, -inf
        %1261 = vmax.xlane.f32.xlu0 %v1260
        %v1262 = vpop.xlane.xlu0 %1261
        %vm1263 = vcmask 92224
        %v1264 = vsel %vm1263, %v1254, -inf
        %1265 = vmax.xlane.f32.xlu0 %v1264
        %v1266 = vpop.xlane.xlu0 %1265
        %vm1267 = vcmask 7168
        %v1268 = vsel %vm1267, %v1258, %v1262
        %vm1269 = vcmask 15360
        %v1270 = vsel %vm1269, %v1268, %v1266
        %vm1271 = vcmask 18432
        %1272 = vst.msk [vmem:[%s254] sm:$0x7] %vm1271, %v1270
        %s1273 = scalar_lea.vmem %s244, 16
        %1274 = vst.msk [vmem:[%s1273] sm:$0xff] %vm1220, %v1184
        %1275 = vst.msk [vmem:[%s1273 + $0x8] sm:$0x1f] %vm1222, %v1185
        %v1276 = vmax.f32 %v1184, 0.0
        %v1277 = vmax.f32 %v1185, 0.0
        %s1278 = scalar_lea.vmem %s249, 16
        %1279 = vst.msk [vmem:[%s1278] sm:$0xff] %vm1220, %v1276
        %1280 = vst.msk [vmem:[%s1278 + $0x8] sm:$0x1f] %vm1222, %v1277
        %v1281 = vsel %vm1228, %v1276, -inf
        %v1282 = vrot.slane %v1281, 4
        %v1283 = vmax.f32 %v1281, %v1282
        %v1284 = vrot.slane %v1283, 2
        %v1285 = vmax.f32 %v1283, %v1284
        %v1286 = vrot.slane %v1285, 1
        %v1287 = vmax.f32 %v1285, %v1286
        %v1288 = vsel %vm1236, %v1276, -inf
        %v1289 = vrot.slane %v1288, 4
        %v1290 = vmax.f32 %v1288, %v1289
        %v1291 = vrot.slane %v1290, 2
        %v1292 = vmax.f32 %v1290, %v1291
        %v1293 = vrot.slane %v1292, 1
        %v1294 = vmax.f32 %v1292, %v1293
        %v1295 = vsel %vm1228, %v1277, -inf
        %v1296 = vrot.slane %v1295, 4
        %v1297 = vmax.f32 %v1295, %v1296
        %v1298 = vrot.slane %v1297, 2
        %v1299 = vmax.f32 %v1297, %v1298
        %v1300 = vrot.slane %v1299, 1
        %v1301 = vmax.f32 %v1299, %v1300
        %v1302 = vsel %vm1251, %v1287, %v1294
        %v1303 = vsel %vm1253, %v1302, %v1301
        %v1304 = vsel %vm1255, %v1303, -inf
        %1305 = vmax.xlane.f32.xlu0 %v1304
        %v1306 = vpop.xlane.xlu0 %1305
        %v1307 = vsel %vm1259, %v1303, -inf
        %1308 = vmax.xlane.f32.xlu0 %v1307
        %v1309 = vpop.xlane.xlu0 %1308
        %v1310 = vsel %vm1263, %v1303, -inf
        %1311 = vmax.xlane.f32.xlu0 %v1310
        %v1312 = vpop.xlane.xlu0 %1311
        %v1313 = vsel %vm1267, %v1306, %v1309
        %v1314 = vsel %vm1269, %v1313, %v1312
        %s1315 = scalar_lea.vmem %s254, 4
        %1316 = vst.msk [vmem:[%s1315] sm:$0x7] %vm1271, %v1314
        %s1317 = scalar_lea.vmem %s244, 32
        %1318 = vst.msk [vmem:[%s1317] sm:$0xff] %vm1220, %v1201
        %1319 = vst.msk [vmem:[%s1317 + $0x8] sm:$0x1f] %vm1222, %v1202
        %v1320 = vmax.f32 %v1201, 0.0
        %v1321 = vmax.f32 %v1202, 0.0
        %s1322 = scalar_lea.vmem %s249, 32
        %1323 = vst.msk [vmem:[%s1322] sm:$0xff] %vm1220, %v1320
        %1324 = vst.msk [vmem:[%s1322 + $0x8] sm:$0x1f] %vm1222, %v1321
        %v1325 = vsel %vm1228, %v1320, -inf
        %v1326 = vrot.slane %v1325, 4
        %v1327 = vmax.f32 %v1325, %v1326
        %v1328 = vrot.slane %v1327, 2
        %v1329 = vmax.f32 %v1327, %v1328
        %v1330 = vrot.slane %v1329, 1
        %v1331 = vmax.f32 %v1329, %v1330
        %v1332 = vsel %vm1236, %v1320, -inf
        %v1333 = vrot.slane %v1332, 4
        %v1334 = vmax.f32 %v1332, %v1333
        %v1335 = vrot.slane %v1334, 2
        %v1336 = vmax.f32 %v1334, %v1335
        %v1337 = vrot.slane %v1336, 1
        %v1338 = vmax.f32 %v1336, %v1337
        %v1339 = vsel %vm1228, %v1321, -inf
        %v1340 = vrot.slane %v1339, 4
        %v1341 = vmax.f32 %v1339, %v1340
        %v1342 = vrot.slane %v1341, 2
        %v1343 = vmax.f32 %v1341, %v1342
        %v1344 = vrot.slane %v1343, 1
        %v1345 = vmax.f32 %v1343, %v1344
        %v1346 = vsel %vm1251, %v1331, %v1338
        %v1347 = vsel %vm1253, %v1346, %v1345
        %v1348 = vsel %vm1255, %v1347, -inf
        %1349 = vmax.xlane.f32.xlu0 %v1348
        %v1350 = vpop.xlane.xlu0 %1349
        %v1351 = vsel %vm1259, %v1347, -inf
        %1352 = vmax.xlane.f32.xlu0 %v1351
        %v1353 = vpop.xlane.xlu0 %1352
        %v1354 = vsel %vm1263, %v1347, -inf
        %1355 = vmax.xlane.f32.xlu0 %v1354
        %v1356 = vpop.xlane.xlu0 %1355
        %v1357 = vsel %vm1267, %v1350, %v1353
        %v1358 = vsel %vm1269, %v1357, %v1356
        %s1359 = scalar_lea.vmem %s254, 8
        %1360 = vst.msk [vmem:[%s1359] sm:$0x7] %vm1271, %v1358
        %s1361 = scalar_lea.vmem %s244, 48
        %1362 = vst.msk [vmem:[%s1361] sm:$0xff] %vm1220, %v1218
        %1363 = vst.msk [vmem:[%s1361 + $0x8] sm:$0x1f] %vm1222, %v1219
        %v1364 = vmax.f32 %v1218, 0.0
        %v1365 = vmax.f32 %v1219, 0.0
        %s1366 = scalar_lea.vmem %s249, 48
        %1367 = vst.msk [vmem:[%s1366] sm:$0xff] %vm1220, %v1364
        %1368 = vst.msk [vmem:[%s1366 + $0x8] sm:$0x1f] %vm1222, %v1365
        %v1369 = vsel %vm1228, %v1364, -inf
        %v1370 = vrot.slane %v1369, 4
        %v1371 = vmax.f32 %v1369, %v1370
        %v1372 = vrot.slane %v1371, 2
        %v1373 = vmax.f32 %v1371, %v1372
        %v1374 = vrot.slane %v1373, 1
        %v1375 = vmax.f32 %v1373, %v1374
        %v1376 = vsel %vm1236, %v1364, -inf
        %v1377 = vrot.slane %v1376, 4
        %v1378 = vmax.f32 %v1376, %v1377
        %v1379 = vrot.slane %v1378, 2
        %v1380 = vmax.f32 %v1378, %v1379
        %v1381 = vrot.slane %v1380, 1
        %v1382 = vmax.f32 %v1380, %v1381
        %v1383 = vsel %vm1228, %v1365, -inf
        %v1384 = vrot.slane %v1383, 4
        %v1385 = vmax.f32 %v1383, %v1384
        %v1386 = vrot.slane %v1385, 2
        %v1387 = vmax.f32 %v1385, %v1386
        %v1388 = vrot.slane %v1387, 1
        %v1389 = vmax.f32 %v1387, %v1388
        %v1390 = vsel %vm1251, %v1375, %v1382
        %v1391 = vsel %vm1253, %v1390, %v1389
        %v1392 = vsel %vm1255, %v1391, -inf
        %1393 = vmax.xlane.f32.xlu0 %v1392
        %v1394 = vpop.xlane.xlu0 %1393
        %v1395 = vsel %vm1259, %v1391, -inf
        %1396 = vmax.xlane.f32.xlu0 %v1395
        %v1397 = vpop.xlane.xlu0 %1396
        %v1398 = vsel %vm1263, %v1391, -inf
        %1399 = vmax.xlane.f32.xlu0 %v1398
        %v1400 = vpop.xlane.xlu0 %1399
        %v1401 = vsel %vm1267, %v1394, %v1397
        %v1402 = vsel %vm1269, %v1401, %v1400
        %s1403 = scalar_lea.vmem %s254, 12
        %1404 = vst.msk [vmem:[%s1403] sm:$0x7] %vm1271, %v1402
        %p1405 = scmp.lt.s32.totalorder %s20, 1
        %s1406 = scalar_select %p1405, %s20, 1
        %s1407 = smul.addr %s1406, 8
        %s1408 = smul.addr %s1407, 8
        %s1409 = scalar_lea.vmem %s2, %s1408
        %p1410 = scmp.lt.s32.totalorder %s20, 1
        %s1411 = scalar_select %p1410, %s20, 1
        %s1412 = smul.addr %s1411, 8
        %s1413 = smul.addr %s1412, 8
        %s1414 = scalar_lea.vmem %s3, %s1413
        %p1415 = scmp.lt.s32.totalorder %s20, 1
        %s1416 = scalar_select %p1415, %s20, 1
        %s1417 = smul.addr %s1416, 4
        %s1418 = smul.addr %s1417, 4
        %s1419 = scalar_lea.vmem %s4, %s1418
        // Predicated region
        $region37: #{tpu_custom_call.1} parent=27 // pred_check
          %p1420 = pneg %p85
        $region38: #{tpu_custom_call.1} parent=27 // pred_check_branch
          %1422 = sbr.rel (%p1420) target = $region40
        $region39: #{tpu_custom_call.1} parent=27 // pred_region
          _
        $region40: #{tpu_custom_call.1} parent=27 // pred_fallthru
          _
        // Predicated region
        $region41: #{tpu_custom_call.1} parent=27 // pred_check
          %p1423 = pneg %p111
        $region42: #{tpu_custom_call.1} parent=27 // pred_check_branch
          %1425 = sbr.rel (%p1423) target = $region44
        $region43: #{tpu_custom_call.1} parent=27 // pred_region
          _
        $region44: #{tpu_custom_call.1} parent=27 // pred_fallthru
          _
        // Predicated region
        $region45: #{tpu_custom_call.1} parent=27 // pred_check
          %p1426 = pneg %p137
        $region46: #{tpu_custom_call.1} parent=27 // pred_check_branch
          %1428 = sbr.rel (%p1426) target = $region48
        $region47: #{tpu_custom_call.1} parent=27 // pred_region
          _
        $region48: #{tpu_custom_call.1} parent=27 // pred_fallthru
          _
      $region28: #{tpu_custom_call.1} parent=5 // pred_fallthru
        _
      %p1429 = scmp.le.s32.totalorder 2, %s15
      // Predicated region
      $region49: #{tpu_custom_call.1} parent=5 // pred_check
        %p1430 = pneg %p1429
      $region50: #{tpu_custom_call.1} parent=5 // pred_check_branch
        %1432 = sbr.rel (%p1430) target = $region52
      $region51: #{tpu_custom_call.1} parent=5 // pred_region
        %s1433 = ssub.s32 %s15, 2
        // Predicated region
        $region53: #{tpu_custom_call.1} parent=51 // pred_check
          %p1434 = pneg %p91
        $region54: #{tpu_custom_call.1} parent=51 // pred_check_branch
          %1436 = sbr.rel (%p1434) target = $region56
        $region55: #{tpu_custom_call.1} parent=51 // pred_region
          %p1437 = scmp.lt.s32.totalorder %s21, 1
          %s1438 = scalar_select %p1437, %s21, 1
          %s1439 = smul.addr %s1438, 8
          %s1440 = smul.addr %s1439, 8
          %s1441 = scalar_lea.vmem %s2, %s1440
        $region56: #{tpu_custom_call.1} parent=51 // pred_fallthru
          _
        // Predicated region
        $region57: #{tpu_custom_call.1} parent=51 // pred_check
          %p1442 = pneg %p117
        $region58: #{tpu_custom_call.1} parent=51 // pred_check_branch
          %1444 = sbr.rel (%p1442) target = $region60
        $region59: #{tpu_custom_call.1} parent=51 // pred_region
          %p1445 = scmp.lt.s32.totalorder %s21, 1
          %s1446 = scalar_select %p1445, %s21, 1
          %s1447 = smul.addr %s1446, 8
          %s1448 = smul.addr %s1447, 8
          %s1449 = scalar_lea.vmem %s3, %s1448
        $region60: #{tpu_custom_call.1} parent=51 // pred_fallthru
          _
        // Predicated region
        $region61: #{tpu_custom_call.1} parent=51 // pred_check
          %p1450 = pneg %p143
        $region62: #{tpu_custom_call.1} parent=51 // pred_check_branch
          %1452 = sbr.rel (%p1450) target = $region64
        $region63: #{tpu_custom_call.1} parent=51 // pred_region
          %p1453 = scmp.lt.s32.totalorder %s21, 1
          %s1454 = scalar_select %p1453, %s21, 1
          %s1455 = smul.addr %s1454, 4
          %s1456 = smul.addr %s1455, 4
          %s1457 = scalar_lea.vmem %s4, %s1456
        $region64: #{tpu_custom_call.1} parent=51 // pred_fallthru
          _
      $region52: #{tpu_custom_call.1} parent=5 // pred_fallthru
        _
    $region6: #{tpu_custom_call.1} parent=1 // loop_footer
      %s19 = sadd.s32 1, %s15
    $region7: #{tpu_custom_call.1} parent=1 // loop_footer_branch
      %14 = sbr.rel target = $region3
    $region8: #{tpu_custom_call.1} parent=1 // loop_exit
      _
    %1458 = vsyncpa [#allocation3], 1
    %s1459 = scalar_lea.sflag [#allocation3], 1
    %1460 = vsyncpa %s1459, 1
    %1461 = vsyncpa [#allocation4], 1
    %s1462 = scalar_lea.sflag [#allocation4], 1
    %1463 = vsyncpa %s1462, 1

</llo_original>
